<compile_context>
chip_gen: v5e
topology: v5e:2x2
jax: 0.10.0
libtpu: 0.0.40
codegen_flags: <defaults>
</compile_context>

<pallas_src>
import functools

import jax
import jax.numpy as jnp
from jax import lax
from jax.experimental import pallas as pl
from jax.experimental.pallas import tpu as pltpu

MASK_VALUE = -1e30


# ----------------------------------------------------------------------------
# helpers
# ----------------------------------------------------------------------------
def _pow_unit(x, n):
    """x ** n for x in [0, 1] and a static Python exponent n (n > 0)."""
    if float(n) == int(n) and int(n) >= 1:
        y = x
        for _ in range(int(n) - 1):
            y = y * x
        return y
    # non-integer power: exp(n*log(x)); x == 0 handled explicitly.
    return jnp.where(x > 0.0, jnp.exp(n * jnp.log(jnp.maximum(x, 1e-30))), 0.0)


def _pick_block_batch(batch, seq_len, dim, target_bytes=2 << 20):
    """Batch-block size: as large as fits the streaming budget, >=2 grid steps."""
    per_batch = max(seq_len * dim * 4, 1)
    bb = max(1, min(batch, target_bytes // per_batch))
    if batch >= 2:
        bb = min(bb, -(-batch // 2))  # keep >= 2 grid steps (v7x has 2 TensorCores)
    return int(bb)


def _vmem_limit_bytes(bb, lp, d, o, in_itemsize):
    """Explicit scoped-VMEM budget (v5e default=16MiB, v7x physical=64MiB)."""
    f32 = 4
    streamed = 2 * (bb * lp * d * in_itemsize + 2 * bb * lp * f32)     # double-buffered h + masks
    weights = 2 * ((d * 2 * d + 2 * d * o + d) * in_itemsize + (2 * d + 1) * f32)
    outs = 2 * 2 * bb * o * f32
    interm = (bb * lp * 2 * d + 3 * bb * lp * o + bb * lp + 4 * bb * o) * f32
    est = streamed + weights + outs + interm
    return int(min(max(2 * est, 8 * 1024 * 1024), 40 * 1024 * 1024))


# ----------------------------------------------------------------------------
# Kernel A: loc_net (Cal_M attention pooling) + modes, per block of BB batches
# ----------------------------------------------------------------------------
def _locnet_modes_kernel(
    h_ref, m_ref, bias_ref,
    w1t_ref, b1_ref, w2t_ref, wr_ref, br_ref,
    mu_ref, modes_ref,
    *, block_batch, seq_len, n_steps, min_step, max_step, approx_recip,
):
    bb, lp, o = block_batch, seq_len, n_steps

    # --- attention MLP over all bb*lp rows in one MXU pass ---
    h = h_ref[...]                                                    # (bb*lp, D)
    a1 = jnp.tanh(
        jnp.dot(h, w1t_ref[...], preferred_element_type=jnp.float32)
        + b1_ref[...])                                                # (bb*lp, 2D) f32
    attn = jnp.dot(a1.astype(w2t_ref.dtype), w2t_ref[...],
                   preferred_element_type=jnp.float32)                # (bb*lp, O)
    # mask: m*attn + (1-m)*MASK_VALUE, with the additive term precomputed
    attn = m_ref[...] * attn + bias_ref[...]

    # --- softmax over L (per batch, per output) ---
    attn = attn.reshape(bb, lp, o)
    attn = attn - jnp.max(attn, axis=1, keepdims=True)
    e = jnp.exp(attn)
    p = e * pl.reciprocal(jnp.sum(e, axis=1, keepdims=True), approx=approx_recip)

    # --- reduce_d head fused: mu[b,o] = sum_l p[b,l,o] * (h @ wr)[b,l] + br ---
    hv = jnp.dot(h, wr_ref[...], preferred_element_type=jnp.float32)  # (bb*lp, 1)
    mu = jnp.sum(p * hv.reshape(bb, lp, 1), axis=1) + br_ref[...]     # (bb, O)
    mu_ref[0] = mu

    # --- modes = clamp(cumsum(softmax([0, mu]))[:, :-1], min, max) ---
    zmax = jnp.maximum(jnp.max(mu, axis=1, keepdims=True), 0.0)       # (bb, 1)
    e0 = jnp.exp(-zmax)                                               # weight of the leading 0
    emu = jnp.exp(mu - zmax)                                          # (bb, O)
    inv_den = pl.reciprocal(e0 + jnp.sum(emu, axis=1, keepdims=True),
                            approx=approx_recip)
    s0 = e0 * inv_den
    smu = emu * inv_den
    # exclusive prefix-sum over O as a tiny matmul with a strictly-upper-tri matrix
    row = lax.broadcasted_iota(jnp.int32, (o, o), 0)
    col = lax.broadcasted_iota(jnp.int32, (o, o), 1)
    tri = jnp.where(row < col, 1.0, 0.0).astype(jnp.float32)
    modes = s0 + jnp.dot(smu, tri, preferred_element_type=jnp.float32)
    modes_ref[0] = jnp.clip(modes, min_step, max_step)


# ----------------------------------------------------------------------------
# Kernel B: TSP cdf + gamma, per block of BB batches ("L on lanes" layout)
# ----------------------------------------------------------------------------
def _tsp_warp_kernel(modes_ref, xr_ref, gamma_ref,
                     *, block_batch, n_steps, width, power):
    bb, o = block_batch, n_steps
    m = modes_ref[...]                                                # (bb*O, 1)
    x = xr_ref[...]                                                   # (1, L)
    a = jnp.clip(m - width / 2.0, 0.0, 1.0 - width)
    b = jnp.clip(a + width, width, 1.0)
    left = (m - a) / (b - a) * _pow_unit(
        jnp.clip((x - a) / (m - a), 0.0, 1.0), power)
    right = 1.0 - (b - m) / (b - a) * _pow_unit(
        jnp.clip((b - x) / (b - m), 0.0, 1.0), power)
    cdf = jnp.where(x <= m, left, right)                              # (bb*O, L)

    # per-batch mean over this block's O rows via a selection matmul
    rowb = lax.broadcasted_iota(jnp.int32, (bb, bb * o), 0)
    colk = lax.broadcasted_iota(jnp.int32, (bb, bb * o), 1)
    sel = jnp.where((colk >= rowb * o) & (colk < (rowb + 1) * o),
                    1.0 / o, 0.0).astype(jnp.float32)
    gamma_ref[0] = jnp.dot(sel, cdf, preferred_element_type=jnp.float32)  # (bb, L)


# ----------------------------------------------------------------------------
# Wrapper
# ----------------------------------------------------------------------------
def tsp_step_warp_forward(h, mask, params, *, width, power,
                          min_step=1e-4, max_step=0.9999,
                          block_batch=None, approx_reciprocal=True,
                          compute_dtype=jnp.float32):
    """h: (B, L, D), mask: (B, L) -> (gamma (B,L), n_steps+1, modes (B,O), mu (B,O)).

    On v6e / v7x pass compute_dtype=jnp.bfloat16 (MXU inputs only; mask,
    softmax and all accumulations stay f32).
    """
    B, L, D = h.shape
    w1, b1, w2, wr, br = params
    O = w2.shape[0]

    bb = block_batch or _pick_block_batch(B, L, D)
    nb = -(-B // bb)
    Bp = nb * bb
    Lp = -(-L // 8) * 8          # pad L so sublane splits stay (8,·)-tile aligned

    h_p = jnp.zeros((Bp, Lp, D), jnp.float32).at[:B, :L].set(h.astype(jnp.float32))
    mask_p = jnp.zeros((Bp, Lp), jnp.float32).at[:B, :L].set(mask.astype(jnp.float32))

    h2 = h_p.reshape(Bp * Lp, D).astype(compute_dtype)
    m2 = mask_p.reshape(Bp * Lp, 1)
    bias2 = (1.0 - m2) * MASK_VALUE                      # additive mask term

    # weights in "x @ W^T" layout; all transposes are wrapper-side plumbing
    w1t = w1.T.astype(compute_dtype)                     # (D, 2D)
    b1r = b1.reshape(1, 2 * D).astype(jnp.float32)
    w2t = w2.T.astype(compute_dtype)                     # (2D, O)
    wrc = wr.reshape(1, D).T.astype(compute_dtype)       # (D, 1), pre-transposed
    brr = br.reshape(1, 1).astype(jnp.float32)

    kernel_a = functools.partial(
        _locnet_modes_kernel, block_batch=bb, seq_len=Lp, n_steps=O,
        min_step=min_step, max_step=max_step, approx_recip=approx_reciprocal)
    vmem_bytes = _vmem_limit_bytes(bb, Lp, D, O, jnp.dtype(compute_dtype).itemsize)

    def call_kernel_a(single_buffer_weights):
        if single_buffer_weights:
            # grid-invariant blocks: no need to double-buffer them
            const = lambda shp: pl.BlockSpec(shp, lambda i: (0,) * len(shp),
                                             pipeline_mode=pl.Buffered(1))
        else:
            const = lambda shp: pl.BlockSpec(shp, lambda i: (0,) * len(shp))
        return pl.pallas_call(
            kernel_a,
            out_shape=(jax.ShapeDtypeStruct((nb, bb, O), jnp.float32),
                       jax.ShapeDtypeStruct((nb, bb, O), jnp.float32)),
            grid_spec=pltpu.PrefetchScalarGridSpec(
                num_scalar_prefetch=0,
                grid=(nb,),
                in_specs=[
                    pl.BlockSpec((bb * Lp, D), lambda i: (i, 0)),   # h rows (streamed)
                    pl.BlockSpec((bb * Lp, 1), lambda i: (i, 0)),   # multiplicative mask
                    pl.BlockSpec((bb * Lp, 1), lambda i: (i, 0)),   # additive mask bias
                    const((D, 2 * D)),                              # W1^T
                    const((1, 2 * D)),                              # b1
                    const((2 * D, O)),                              # W2^T
                    const((D, 1)),                                  # Wr^T
                    const((1, 1)),                                  # br
                ],
                out_specs=[
                    pl.BlockSpec((1, bb, O), lambda i: (i, 0, 0)),  # mu
                    pl.BlockSpec((1, bb, O), lambda i: (i, 0, 0)),  # modes
                ],
            ),
            compiler_params=pltpu.CompilerParams(
                dimension_semantics=("parallel",),
                vmem_limit_bytes=vmem_bytes),
        )(h2, m2, bias2, w1t, b1r, w2t, wrc, brr)

    try:
        mu_blk, modes_blk = call_kernel_a(True)
    except Exception:
        # pl.Buffered(1) not supported on this jax/libtpu -> default buffering
        mu_blk, modes_blk = call_kernel_a(False)

    mu = mu_blk.reshape(Bp, O)[:B]
    modes = modes_blk.reshape(Bp, O)[:B]

    # --- TSP warp kernel: (bb*O, L) cdf tile per grid step, L on lanes ---
    modes_flat = modes_blk.reshape(Bp * O, 1)
    xr = jnp.linspace(0.0, 1.0, L, dtype=jnp.float32).reshape(1, L)
    kernel_b = functools.partial(_tsp_warp_kernel, block_batch=bb, n_steps=O,
                                 width=width, power=power)
    gamma_blk = pl.pallas_call(
        kernel_b,
        out_shape=jax.ShapeDtypeStruct((nb, bb, L), jnp.float32),
        grid_spec=pltpu.PrefetchScalarGridSpec(
            num_scalar_prefetch=0,
            grid=(nb,),
            in_specs=[
                pl.BlockSpec((bb * O, 1), lambda i: (i, 0)),   # clamped modes
                pl.BlockSpec((1, L), lambda i: (0, 0)),        # linspace(0, 1, L)
            ],
            out_specs=pl.BlockSpec((1, bb, L), lambda i: (i, 0, 0)),
        ),
        compiler_params=pltpu.CompilerParams(dimension_semantics=("parallel",)),
    )(modes_flat, xr)
    gamma = gamma_blk.reshape(Bp, L)[:B]

    return gamma, O + 1, modes, mu


# ----------------------------------------------------------------------------
# Parameters (PyTorch layouts) and a plain-JAX reference of the module
# ----------------------------------------------------------------------------
def init_params(key, dim, output_len):
    k1, k2, k3, k4, k5 = jax.random.split(key, 5)
    w1 = jax.random.normal(k1, (2 * dim, dim), jnp.float32) * 0.1      # Linear(D, 2D).weight
    b1 = jax.random.normal(k2, (2 * dim,), jnp.float32) * 0.1
    w2 = jax.random.normal(k3, (output_len, 2 * dim), jnp.float32) * 0.1  # Linear(2D, O, no bias)
    wr = jax.random.normal(k4, (1, dim), jnp.float32) * 0.1            # Linear(D, 1).weight
    br = jax.random.normal(k5, (1,), jnp.float32) * 0.1
    return (w1, b1, w2, wr, br)


def _cal_m_reference(h, mask, params):
    w1, b1, w2, wr, br = params
    m = mask[..., None].astype(jnp.float32)
    attn = jnp.tanh(h @ w1.T + b1) @ w2.T                              # (B, L, O)
    attn = m * attn + (1.0 - m) * MASK_VALUE
    attn = jax.nn.softmax(attn, axis=-2)
    pooled = jnp.einsum("bld,blo->bod", h, attn)                       # (B, O, D)
    return jnp.einsum("bod,d->bo", pooled, wr[0]) + br[0]              # (B, O)


def tsp_step_warp_reference(h, mask, params, *, width, power, min_step, max_step):
    B, L, _ = h.shape
    mu = _cal_m_reference(h, mask, params)                             # (B, O)
    O = mu.shape[1]
    z = jnp.concatenate([jnp.zeros((B, 1), mu.dtype), mu], axis=1)
    modes = jnp.cumsum(jax.nn.softmax(z, axis=1), axis=1)[:, :-1]
    modes = jnp.clip(modes, min_step, max_step)
    x = jnp.linspace(0.0, 1.0, L)[None, :]                             # (1, L)
    mf = modes.reshape(-1, 1)                                          # (B*O, 1)
    a = jnp.clip(mf - width / 2.0, 0.0, 1.0 - width)
    b = jnp.clip(a + width, width, 1.0)
    n = power
    cdf = ((x <= mf) * ((mf - a) / (b - a) * jnp.clip((x - a) / (mf - a), 0.0, 1.0) ** n)
           + (mf < x) * (1.0 - (b - mf) / (b - a) * jnp.clip((b - x) / (b - mf), 0.0, 1.0) ** n))
    gamma = cdf.reshape(B, O, L).sum(axis=1) / O
    return gamma, O + 1, modes, mu


# ----------------------------------------------------------------------------
if __name__ == "__main__":
    B, L, D, O = 4, 16, 32, 8          # batch, seq_len, input_size, n_steps
    WIDTH, POWER = 0.4, 2.0
    MIN_STEP, MAX_STEP = 1e-4, 0.9999

    key = jax.random.PRNGKey(0)
    kh, kp = jax.random.split(key)
    h = jax.random.normal(kh, (B, L, D), jnp.float32)
    mask = jnp.ones((B, L), jnp.float32).at[1, L - 5:].set(0.0).at[3, L - 2:].set(0.0)
    params = init_params(kp, D, O)

    with jax.default_matmul_precision("highest"):
        gamma_r, nsteps_r, modes_r, mu_r = tsp_step_warp_reference(
            h, mask, params, width=WIDTH, power=POWER,
            min_step=MIN_STEP, max_step=MAX_STEP)

    # exact-reciprocal path: tight correctness check of the Pallas kernels
    gamma, nsteps, modes, mu = tsp_step_warp_forward(
        h, mask, params, width=WIDTH, power=POWER,
        min_step=MIN_STEP, max_step=MAX_STEP, approx_reciprocal=False)
    jax.block_until_ready(gamma)
    assert nsteps == nsteps_r
    assert gamma.shape == (B, L) and modes.shape == (B, O) and mu.shape == (B, O)
    for name, got, want in (("mu", mu, mu_r), ("modes", modes, modes_r),
                            ("gamma", gamma, gamma_r)):
        assert jnp.allclose(got, want, atol=2e-3, rtol=2e-3), (name, got, want)

    # fast path: approximate EUP reciprocal in the softmax normalizations
    gamma_f, _, modes_f, mu_f = tsp_step_warp_forward(
        h, mask, params, width=WIDTH, power=POWER,
        min_step=MIN_STEP, max_step=MAX_STEP, approx_reciprocal=True)
    jax.block_until_ready(gamma_f)
    assert jnp.allclose(gamma_f, gamma_r, atol=2e-2, rtol=2e-2)
    assert jnp.allclose(mu_f, mu_r, atol=2e-2, rtol=2e-2)

    print("KERNEL_OK")
</pallas_src>

<mosaic_0001>
module attributes {stable_mosaic.version = 11 : i64} {
  func.func @_locnet_modes_kernel(%arg0: i32, %arg1: memref<32x32xf32, #tpu.memory_space<vmem>>, %arg2: memref<32x1xf32, #tpu.memory_space<vmem>>, %arg3: memref<32x1xf32, #tpu.memory_space<vmem>>, %arg4: memref<32x64xf32, #tpu.memory_space<vmem>>, %arg5: memref<1x64xf32, #tpu.memory_space<vmem>>, %arg6: memref<64x8xf32, #tpu.memory_space<vmem>>, %arg7: memref<32x1xf32, #tpu.memory_space<vmem>>, %arg8: memref<1x1xf32, #tpu.memory_space<vmem>>, %arg9: memref<1x2x8xf32, #tpu.memory_space<vmem>>, %arg10: memref<1x2x8xf32, #tpu.memory_space<vmem>>) attributes {dimension_semantics = [#tpu.dimension_semantics<parallel>], iteration_bounds = array<i64: 2>, scalar_prefetch = 0 : i64, scratch_operands = 0 : i64, tpu.core_type = #tpu.core_type<tc>, window_params = [{transform_indices = @transform_0, window_bounds = array<i64: 32, 32>}, {transform_indices = @transform_1, window_bounds = array<i64: 32, 1>}, {transform_indices = @transform_2, window_bounds = array<i64: 32, 1>}, {pipeline_mode = #tpu.pipeline_mode<synchronous>, transform_indices = @transform_3, window_bounds = array<i64: 32, 64>}, {pipeline_mode = #tpu.pipeline_mode<synchronous>, transform_indices = @transform_4, window_bounds = array<i64: 1, 64>}, {pipeline_mode = #tpu.pipeline_mode<synchronous>, transform_indices = @transform_5, window_bounds = array<i64: 64, 8>}, {pipeline_mode = #tpu.pipeline_mode<synchronous>, transform_indices = @transform_6, window_bounds = array<i64: 32, 1>}, {pipeline_mode = #tpu.pipeline_mode<synchronous>, transform_indices = @transform_7, window_bounds = array<i64: 1, 1>}, {transform_indices = @transform_8, window_bounds = array<i64: 1, 2, 8>}, {transform_indices = @transform_9, window_bounds = array<i64: 1, 2, 8>}]} {
    %c0 = arith.constant 0 : index
    %c0_0 = arith.constant 0 : index
    %0 = vector.load %arg1[%c0, %c0_0] : memref<32x32xf32, #tpu.memory_space<vmem>>, vector<32x32xf32>
    %c0_1 = arith.constant 0 : index
    %c0_2 = arith.constant 0 : index
    %1 = vector.load %arg4[%c0_1, %c0_2] : memref<32x64xf32, #tpu.memory_space<vmem>>, vector<32x64xf32>
    %cst = arith.constant dense<0.000000e+00> : vector<32x64xf32>
    %2 = tpu.matmul %0, %1, %cst {dimension_numbers = #tpu.dot_dimension_numbers<[1], [0], [0], [1], [0, 0, 1, 1], [], []>} : vector<32x32xf32>, vector<32x64xf32>, vector<32x64xf32> -> vector<32x64xf32>
    %c0_3 = arith.constant 0 : index
    %c0_4 = arith.constant 0 : index
    %3 = vector.load %arg5[%c0_3, %c0_4] : memref<1x64xf32, #tpu.memory_space<vmem>>, vector<1x64xf32>
    %4 = vector.broadcast %3 : vector<1x64xf32> to vector<32x64xf32>
    %5 = arith.addf %2, %4 : vector<32x64xf32>
    %6 = math.tanh %5 : vector<32x64xf32>
    %c0_5 = arith.constant 0 : index
    %c0_6 = arith.constant 0 : index
    %7 = vector.load %arg6[%c0_5, %c0_6] : memref<64x8xf32, #tpu.memory_space<vmem>>, vector<64x8xf32>
    %cst_7 = arith.constant dense<0.000000e+00> : vector<32x8xf32>
    %8 = tpu.matmul %6, %7, %cst_7 {dimension_numbers = #tpu.dot_dimension_numbers<[1], [0], [0], [1], [0, 0, 1, 1], [], []>} : vector<32x64xf32>, vector<64x8xf32>, vector<32x8xf32> -> vector<32x8xf32>
    %c0_8 = arith.constant 0 : index
    %c0_9 = arith.constant 0 : index
    %9 = vector.load %arg2[%c0_8, %c0_9] : memref<32x1xf32, #tpu.memory_space<vmem>>, vector<32x1xf32>
    %10 = vector.broadcast %9 : vector<32x1xf32> to vector<32x8xf32>
    %11 = arith.mulf %10, %8 : vector<32x8xf32>
    %c0_10 = arith.constant 0 : index
    %c0_11 = arith.constant 0 : index
    %12 = vector.load %arg3[%c0_10, %c0_11] : memref<32x1xf32, #tpu.memory_space<vmem>>, vector<32x1xf32>
    %13 = vector.broadcast %12 : vector<32x1xf32> to vector<32x8xf32>
    %14 = arith.addf %11, %13 : vector<32x8xf32>
    %15 = vector.shape_cast %14 : vector<32x8xf32> to vector<2x16x8xf32>
    %cst_12 = arith.constant dense<0xFF800000> : vector<2x8xf32>
    %16 = vector.multi_reduction <maximumf>, %15, %cst_12 [1] : vector<2x16x8xf32> to vector<2x8xf32>
    %17 = vector.shape_cast %16 : vector<2x8xf32> to vector<2x1x8xf32>
    %18 = vector.broadcast %17 : vector<2x1x8xf32> to vector<2x16x8xf32>
    %19 = arith.subf %15, %18 : vector<2x16x8xf32>
    %20 = math.exp %19 : vector<2x16x8xf32>
    %cst_13 = arith.constant dense<0.000000e+00> : vector<2x8xf32>
    %21 = vector.multi_reduction <add>, %20, %cst_13 [1] : vector<2x16x8xf32> to vector<2x8xf32>
    %22 = vector.shape_cast %21 : vector<2x8xf32> to vector<2x1x8xf32>
    %23 = tpu.reciprocal %22 : vector<2x1x8xf32> -> vector<2x1x8xf32>
    %24 = vector.broadcast %23 : vector<2x1x8xf32> to vector<2x16x8xf32>
    %25 = arith.mulf %20, %24 : vector<2x16x8xf32>
    %c0_14 = arith.constant 0 : index
    %c0_15 = arith.constant 0 : index
    %26 = vector.load %arg7[%c0_14, %c0_15] : memref<32x1xf32, #tpu.memory_space<vmem>>, vector<32x1xf32>
    %cst_16 = arith.constant dense<0.000000e+00> : vector<32x1xf32>
    %27 = tpu.matmul %0, %26, %cst_16 {dimension_numbers = #tpu.dot_dimension_numbers<[1], [0], [0], [1], [0, 0, 1, 1], [], []>} : vector<32x32xf32>, vector<32x1xf32>, vector<32x1xf32> -> vector<32x1xf32>
    %28 = vector.shape_cast %27 : vector<32x1xf32> to vector<2x16x1xf32>
    %29 = vector.broadcast %28 : vector<2x16x1xf32> to vector<2x16x8xf32>
    %30 = arith.mulf %25, %29 : vector<2x16x8xf32>
    %cst_17 = arith.constant dense<0.000000e+00> : vector<2x8xf32>
    %31 = vector.multi_reduction <add>, %30, %cst_17 [1] : vector<2x16x8xf32> to vector<2x8xf32>
    %c0_18 = arith.constant 0 : index
    %c0_19 = arith.constant 0 : index
    %32 = vector.load %arg8[%c0_18, %c0_19] : memref<1x1xf32, #tpu.memory_space<vmem>>, vector<1x1xf32>
    %33 = vector.broadcast %32 : vector<1x1xf32> to vector<2x8xf32>
    %34 = arith.addf %31, %33 : vector<2x8xf32>
    %c0_20 = arith.constant 0 : index
    %c0_21 = arith.constant 0 : index
    %c0_22 = arith.constant 0 : index
    %35 = vector.load %arg9[%c0_20, %c0_21, %c0_22] : memref<1x2x8xf32, #tpu.memory_space<vmem>>, vector<1x2x8xf32>
    %36 = vector.shape_cast %35 : vector<1x2x8xf32> to vector<2x8xf32>
    %37 = vector.shape_cast %34 : vector<2x8xf32> to vector<1x2x8xf32>
    tpu.vector_store %arg9[%c0_20, %c0_21, %c0_22], %37 {strides = array<i32>} : memref<1x2x8xf32, #tpu.memory_space<vmem>>, vector<1x2x8xf32>,
    %cst_23 = arith.constant dense<0xFF800000> : vector<2xf32>
    %38 = vector.multi_reduction <maximumf>, %34, %cst_23 [1] : vector<2x8xf32> to vector<2xf32>
    %39 = vector.shape_cast %38 : vector<2xf32> to vector<2x1xf32>
    %cst_24 = arith.constant 0.000000e+00 : f32
    %40 = vector.broadcast %cst_24 : f32 to vector<2x1xf32>
    %41 = arith.maximumf %39, %40 : vector<2x1xf32>
    %cst_25 = arith.constant 0.000000e+00 : f32
    %42 = vector.broadcast %cst_25 : f32 to vector<2x1xf32>
    %43 = arith.subf %42, %41 : vector<2x1xf32>
    %44 = math.exp %43 : vector<2x1xf32>
    %45 = vector.broadcast %41 : vector<2x1xf32> to vector<2x8xf32>
    %46 = arith.subf %34, %45 : vector<2x8xf32>
    %47 = math.exp %46 : vector<2x8xf32>
    %cst_26 = arith.constant dense<0.000000e+00> : vector<2xf32>
    %48 = vector.multi_reduction <add>, %47, %cst_26 [1] : vector<2x8xf32> to vector<2xf32>
    %49 = vector.shape_cast %48 : vector<2xf32> to vector<2x1xf32>
    %50 = arith.addf %44, %49 : vector<2x1xf32>
    %51 = tpu.reciprocal %50 : vector<2x1xf32> -> vector<2x1xf32>
    %52 = arith.mulf %44, %51 : vector<2x1xf32>
    %53 = vector.broadcast %51 : vector<2x1xf32> to vector<2x8xf32>
    %54 = arith.mulf %47, %53 : vector<2x8xf32>
    %55 = tpu.iota {dimensions = array<i32: 0>} : vector<8x8xi32>
    %56 = tpu.iota {dimensions = array<i32: 1>} : vector<8x8xi32>
    %57 = arith.cmpi slt, %55, %56 : vector<8x8xi32>
    %cst_27 = arith.constant 1.000000e+00 : f32
    %cst_28 = arith.constant 0.000000e+00 : f32
    %58 = vector.broadcast %cst_27 : f32 to vector<8x8xf32>
    %59 = vector.broadcast %cst_28 : f32 to vector<8x8xf32>
    %60 = arith.select %57, %58, %59 : vector<8x8xi1>, vector<8x8xf32>
    %cst_29 = arith.constant dense<0.000000e+00> : vector<2x8xf32>
    %61 = tpu.matmul %54, %60, %cst_29 {dimension_numbers = #tpu.dot_dimension_numbers<[1], [0], [0], [1], [0, 0, 1, 1], [], []>} : vector<2x8xf32>, vector<8x8xf32>, vector<2x8xf32> -> vector<2x8xf32>
    %62 = vector.broadcast %52 : vector<2x1xf32> to vector<2x8xf32>
    %63 = arith.addf %62, %61 : vector<2x8xf32>
    %cst_30 = arith.constant 9.99999974E-5 : f32
    %cst_31 = arith.constant 0.999899983 : f32
    %64 = vector.broadcast %cst_30 : f32 to vector<2x8xf32>
    %65 = arith.maximumf %64, %63 : vector<2x8xf32>
    %66 = vector.broadcast %cst_31 : f32 to vector<2x8xf32>
    %67 = arith.minimumf %66, %65 : vector<2x8xf32>
    %c0_32 = arith.constant 0 : index
    %c0_33 = arith.constant 0 : index
    %c0_34 = arith.constant 0 : index
    %68 = vector.load %arg10[%c0_32, %c0_33, %c0_34] : memref<1x2x8xf32, #tpu.memory_space<vmem>>, vector<1x2x8xf32>
    %69 = vector.shape_cast %68 : vector<1x2x8xf32> to vector<2x8xf32>
    %70 = vector.shape_cast %67 : vector<2x8xf32> to vector<1x2x8xf32>
    tpu.vector_store %arg10[%c0_32, %c0_33, %c0_34], %70 {strides = array<i32>} : memref<1x2x8xf32, #tpu.memory_space<vmem>>, vector<1x2x8xf32>,
    return
  }
  func.func @transform_0(%arg0: i32) -> (i32, i32) {
    %c0_i32 = arith.constant 0 : i32
    %c0_i32_0 = arith.constant 0 : i32
    return %arg0, %c0_i32 : i32, i32
  }
  func.func @transform_1(%arg0: i32) -> (i32, i32) {
    %c0_i32 = arith.constant 0 : i32
    %c0_i32_0 = arith.constant 0 : i32
    return %arg0, %c0_i32 : i32, i32
  }
  func.func @transform_2(%arg0: i32) -> (i32, i32) {
    %c0_i32 = arith.constant 0 : i32
    %c0_i32_0 = arith.constant 0 : i32
    return %arg0, %c0_i32 : i32, i32
  }
  func.func @transform_3(%arg0: i32) -> (i32, i32) {
    %c0_i32 = arith.constant 0 : i32
    %c0_i32_0 = arith.constant 0 : i32
    %c0_i32_1 = arith.constant 0 : i32
    return %c0_i32, %c0_i32_0 : i32, i32
  }
  func.func @transform_4(%arg0: i32) -> (i32, i32) {
    %c0_i32 = arith.constant 0 : i32
    %c0_i32_0 = arith.constant 0 : i32
    %c0_i32_1 = arith.constant 0 : i32
    return %c0_i32, %c0_i32_0 : i32, i32
  }
  func.func @transform_5(%arg0: i32) -> (i32, i32) {
    %c0_i32 = arith.constant 0 : i32
    %c0_i32_0 = arith.constant 0 : i32
    %c0_i32_1 = arith.constant 0 : i32
    return %c0_i32, %c0_i32_0 : i32, i32
  }
  func.func @transform_6(%arg0: i32) -> (i32, i32) {
    %c0_i32 = arith.constant 0 : i32
    %c0_i32_0 = arith.constant 0 : i32
    %c0_i32_1 = arith.constant 0 : i32
    return %c0_i32, %c0_i32_0 : i32, i32
  }
  func.func @transform_7(%arg0: i32) -> (i32, i32) {
    %c0_i32 = arith.constant 0 : i32
    %c0_i32_0 = arith.constant 0 : i32
    %c0_i32_1 = arith.constant 0 : i32
    return %c0_i32, %c0_i32_0 : i32, i32
  }
  func.func @transform_8(%arg0: i32) -> (i32, i32, i32) {
    %c0_i32 = arith.constant 0 : i32
    %c0_i32_0 = arith.constant 0 : i32
    %c0_i32_1 = arith.constant 0 : i32
    return %arg0, %c0_i32, %c0_i32_0 : i32, i32, i32
  }
  func.func @transform_9(%arg0: i32) -> (i32, i32, i32) {
    %c0_i32 = arith.constant 0 : i32
    %c0_i32_0 = arith.constant 0 : i32
    %c0_i32_1 = arith.constant 0 : i32
    return %arg0, %c0_i32, %c0_i32_0 : i32, i32, i32
  }
}

module attributes {stable_mosaic.version = 11 : i64} {
  func.func @_locnet_modes_kernel(%arg0: i32, %arg1: memref<32x32xf32, #tpu.memory_space<vmem>>, %arg2: memref<32x1xf32, #tpu.memory_space<vmem>>, %arg3: memref<32x1xf32, #tpu.memory_space<vmem>>, %arg4: memref<32x64xf32, #tpu.memory_space<vmem>>, %arg5: memref<1x64xf32, #tpu.memory_space<vmem>>, %arg6: memref<64x8xf32, #tpu.memory_space<vmem>>, %arg7: memref<32x1xf32, #tpu.memory_space<vmem>>, %arg8: memref<1x1xf32, #tpu.memory_space<vmem>>, %arg9: memref<1x2x8xf32, #tpu.memory_space<vmem>>, %arg10: memref<1x2x8xf32, #tpu.memory_space<vmem>>) attributes {dimension_semantics = [#tpu.dimension_semantics<parallel>], iteration_bounds = array<i64: 2>, scalar_prefetch = 0 : i64, scratch_operands = 0 : i64, tpu.core_type = #tpu.core_type<tc>, window_params = [{transform_indices = @transform_0, window_bounds = array<i64: 32, 32>}, {transform_indices = @transform_1, window_bounds = array<i64: 32, 1>}, {transform_indices = @transform_2, window_bounds = array<i64: 32, 1>}, {pipeline_mode = #tpu.pipeline_mode<synchronous>, transform_indices = @transform_3, window_bounds = array<i64: 32, 64>}, {pipeline_mode = #tpu.pipeline_mode<synchronous>, transform_indices = @transform_4, window_bounds = array<i64: 1, 64>}, {pipeline_mode = #tpu.pipeline_mode<synchronous>, transform_indices = @transform_5, window_bounds = array<i64: 64, 8>}, {pipeline_mode = #tpu.pipeline_mode<synchronous>, transform_indices = @transform_6, window_bounds = array<i64: 32, 1>}, {pipeline_mode = #tpu.pipeline_mode<synchronous>, transform_indices = @transform_7, window_bounds = array<i64: 1, 1>}, {transform_indices = @transform_8, window_bounds = array<i64: 1, 2, 8>}, {transform_indices = @transform_9, window_bounds = array<i64: 1, 2, 8>}]} {
    %c0 = arith.constant 0 : index
    %c0_0 = arith.constant 0 : index
    %0 = vector.load %arg1[%c0, %c0_0] : memref<32x32xf32, #tpu.memory_space<vmem>>, vector<32x32xf32>
    %c0_1 = arith.constant 0 : index
    %c0_2 = arith.constant 0 : index
    %1 = vector.load %arg4[%c0_1, %c0_2] : memref<32x64xf32, #tpu.memory_space<vmem>>, vector<32x64xf32>
    %cst = arith.constant dense<0.000000e+00> : vector<32x64xf32>
    %2 = tpu.matmul %0, %1, %cst {dimension_numbers = #tpu.dot_dimension_numbers<[1], [0], [0], [1], [0, 0, 1, 1], [], []>} : vector<32x32xf32>, vector<32x64xf32>, vector<32x64xf32> -> vector<32x64xf32>
    %c0_3 = arith.constant 0 : index
    %c0_4 = arith.constant 0 : index
    %3 = vector.load %arg5[%c0_3, %c0_4] : memref<1x64xf32, #tpu.memory_space<vmem>>, vector<1x64xf32>
    %4 = vector.broadcast %3 : vector<1x64xf32> to vector<32x64xf32>
    %5 = arith.addf %2, %4 : vector<32x64xf32>
    %6 = math.tanh %5 : vector<32x64xf32>
    %c0_5 = arith.constant 0 : index
    %c0_6 = arith.constant 0 : index
    %7 = vector.load %arg6[%c0_5, %c0_6] : memref<64x8xf32, #tpu.memory_space<vmem>>, vector<64x8xf32>
    %cst_7 = arith.constant dense<0.000000e+00> : vector<32x8xf32>
    %8 = tpu.matmul %6, %7, %cst_7 {dimension_numbers = #tpu.dot_dimension_numbers<[1], [0], [0], [1], [0, 0, 1, 1], [], []>} : vector<32x64xf32>, vector<64x8xf32>, vector<32x8xf32> -> vector<32x8xf32>
    %c0_8 = arith.constant 0 : index
    %c0_9 = arith.constant 0 : index
    %9 = vector.load %arg2[%c0_8, %c0_9] : memref<32x1xf32, #tpu.memory_space<vmem>>, vector<32x1xf32>
    %10 = vector.broadcast %9 : vector<32x1xf32> to vector<32x8xf32>
    %11 = arith.mulf %10, %8 : vector<32x8xf32>
    %c0_10 = arith.constant 0 : index
    %c0_11 = arith.constant 0 : index
    %12 = vector.load %arg3[%c0_10, %c0_11] : memref<32x1xf32, #tpu.memory_space<vmem>>, vector<32x1xf32>
    %13 = vector.broadcast %12 : vector<32x1xf32> to vector<32x8xf32>
    %14 = arith.addf %11, %13 : vector<32x8xf32>
    %15 = vector.shape_cast %14 : vector<32x8xf32> to vector<2x16x8xf32>
    %cst_12 = arith.constant dense<0xFF800000> : vector<2x8xf32>
    %16 = vector.multi_reduction <maximumf>, %15, %cst_12 [1] : vector<2x16x8xf32> to vector<2x8xf32>
    %17 = vector.shape_cast %16 : vector<2x8xf32> to vector<2x1x8xf32>
    %18 = vector.broadcast %17 : vector<2x1x8xf32> to vector<2x16x8xf32>
    %19 = arith.subf %15, %18 : vector<2x16x8xf32>
    %20 = math.exp %19 : vector<2x16x8xf32>
    %cst_13 = arith.constant dense<0.000000e+00> : vector<2x8xf32>
    %21 = vector.multi_reduction <add>, %20, %cst_13 [1] : vector<2x16x8xf32> to vector<2x8xf32>
    %22 = vector.shape_cast %21 : vector<2x8xf32> to vector<2x1x8xf32>
    %23 = tpu.reciprocal %22 : vector<2x1x8xf32> -> vector<2x1x8xf32>
    %24 = vector.broadcast %23 : vector<2x1x8xf32> to vector<2x16x8xf32>
    %25 = arith.mulf %20, %24 : vector<2x16x8xf32>
    %c0_14 = arith.constant 0 : index
    %c0_15 = arith.constant 0 : index
    %26 = vector.load %arg7[%c0_14, %c0_15] : memref<32x1xf32, #tpu.memory_space<vmem>>, vector<32x1xf32>
    %cst_16 = arith.constant dense<0.000000e+00> : vector<32x1xf32>
    %27 = tpu.matmul %0, %26, %cst_16 {dimension_numbers = #tpu.dot_dimension_numbers<[1], [0], [0], [1], [0, 0, 1, 1], [], []>} : vector<32x32xf32>, vector<32x1xf32>, vector<32x1xf32> -> vector<32x1xf32>
    %28 = vector.shape_cast %27 : vector<32x1xf32> to vector<2x16x1xf32>
    %29 = vector.broadcast %28 : vector<2x16x1xf32> to vector<2x16x8xf32>
    %30 = arith.mulf %25, %29 : vector<2x16x8xf32>
    %cst_17 = arith.constant dense<0.000000e+00> : vector<2x8xf32>
    %31 = vector.multi_reduction <add>, %30, %cst_17 [1] : vector<2x16x8xf32> to vector<2x8xf32>
    %c0_18 = arith.constant 0 : index
    %c0_19 = arith.constant 0 : index
    %32 = vector.load %arg8[%c0_18, %c0_19] : memref<1x1xf32, #tpu.memory_space<vmem>>, vector<1x1xf32>
    %33 = vector.broadcast %32 : vector<1x1xf32> to vector<2x8xf32>
    %34 = arith.addf %31, %33 : vector<2x8xf32>
    %c0_20 = arith.constant 0 : index
    %c0_21 = arith.constant 0 : index
    %c0_22 = arith.constant 0 : index
    %35 = vector.load %arg9[%c0_20, %c0_21, %c0_22] : memref<1x2x8xf32, #tpu.memory_space<vmem>>, vector<1x2x8xf32>
    %36 = vector.shape_cast %35 : vector<1x2x8xf32> to vector<2x8xf32>
    %37 = vector.shape_cast %34 : vector<2x8xf32> to vector<1x2x8xf32>
    tpu.vector_store %arg9[%c0_20, %c0_21, %c0_22], %37 {strides = array<i32>} : memref<1x2x8xf32, #tpu.memory_space<vmem>>, vector<1x2x8xf32>,
    %cst_23 = arith.constant dense<0xFF800000> : vector<2xf32>
    %38 = vector.multi_reduction <maximumf>, %34, %cst_23 [1] : vector<2x8xf32> to vector<2xf32>
    %39 = vector.shape_cast %38 : vector<2xf32> to vector<2x1xf32>
    %cst_24 = arith.constant 0.000000e+00 : f32
    %40 = vector.broadcast %cst_24 : f32 to vector<2x1xf32>
    %41 = arith.maximumf %39, %40 : vector<2x1xf32>
    %cst_25 = arith.constant 0.000000e+00 : f32
    %42 = vector.broadcast %cst_25 : f32 to vector<2x1xf32>
    %43 = arith.subf %42, %41 : vector<2x1xf32>
    %44 = math.exp %43 : vector<2x1xf32>
    %45 = vector.broadcast %41 : vector<2x1xf32> to vector<2x8xf32>
    %46 = arith.subf %34, %45 : vector<2x8xf32>
    %47 = math.exp %46 : vector<2x8xf32>
    %cst_26 = arith.constant dense<0.000000e+00> : vector<2xf32>
    %48 = vector.multi_reduction <add>, %47, %cst_26 [1] : vector<2x8xf32> to vector<2xf32>
    %49 = vector.shape_cast %48 : vector<2xf32> to vector<2x1xf32>
    %50 = arith.addf %44, %49 : vector<2x1xf32>
    %51 = tpu.reciprocal %50 : vector<2x1xf32> -> vector<2x1xf32>
    %52 = arith.mulf %44, %51 : vector<2x1xf32>
    %53 = vector.broadcast %51 : vector<2x1xf32> to vector<2x8xf32>
    %54 = arith.mulf %47, %53 : vector<2x8xf32>
    %55 = tpu.iota {dimensions = array<i32: 0>} : vector<8x8xi32>
    %56 = tpu.iota {dimensions = array<i32: 1>} : vector<8x8xi32>
    %57 = arith.cmpi slt, %55, %56 : vector<8x8xi32>
    %cst_27 = arith.constant 1.000000e+00 : f32
    %cst_28 = arith.constant 0.000000e+00 : f32
    %58 = vector.broadcast %cst_27 : f32 to vector<8x8xf32>
    %59 = vector.broadcast %cst_28 : f32 to vector<8x8xf32>
    %60 = arith.select %57, %58, %59 : vector<8x8xi1>, vector<8x8xf32>
    %cst_29 = arith.constant dense<0.000000e+00> : vector<2x8xf32>
    %61 = tpu.matmul %54, %60, %cst_29 {dimension_numbers = #tpu.dot_dimension_numbers<[1], [0], [0], [1], [0, 0, 1, 1], [], []>} : vector<2x8xf32>, vector<8x8xf32>, vector<2x8xf32> -> vector<2x8xf32>
    %62 = vector.broadcast %52 : vector<2x1xf32> to vector<2x8xf32>
    %63 = arith.addf %62, %61 : vector<2x8xf32>
    %cst_30 = arith.constant 9.99999974E-5 : f32
    %cst_31 = arith.constant 0.999899983 : f32
    %64 = vector.broadcast %cst_30 : f32 to vector<2x8xf32>
    %65 = arith.maximumf %64, %63 : vector<2x8xf32>
    %66 = vector.broadcast %cst_31 : f32 to vector<2x8xf32>
    %67 = arith.minimumf %66, %65 : vector<2x8xf32>
    %c0_32 = arith.constant 0 : index
    %c0_33 = arith.constant 0 : index
    %c0_34 = arith.constant 0 : index
    %68 = vector.load %arg10[%c0_32, %c0_33, %c0_34] : memref<1x2x8xf32, #tpu.memory_space<vmem>>, vector<1x2x8xf32>
    %69 = vector.shape_cast %68 : vector<1x2x8xf32> to vector<2x8xf32>
    %70 = vector.shape_cast %67 : vector<2x8xf32> to vector<1x2x8xf32>
    tpu.vector_store %arg10[%c0_32, %c0_33, %c0_34], %70 {strides = array<i32>} : memref<1x2x8xf32, #tpu.memory_space<vmem>>, vector<1x2x8xf32>,
    return
  }
  func.func @transform_0(%arg0: i32) -> (i32, i32) {
    %c0_i32 = arith.constant 0 : i32
    %c0_i32_0 = arith.constant 0 : i32
    return %arg0, %c0_i32 : i32, i32
  }
  func.func @transform_1(%arg0: i32) -> (i32, i32) {
    %c0_i32 = arith.constant 0 : i32
    %c0_i32_0 = arith.constant 0 : i32
    return %arg0, %c0_i32 : i32, i32
  }
  func.func @transform_2(%arg0: i32) -> (i32, i32) {
    %c0_i32 = arith.constant 0 : i32
    %c0_i32_0 = arith.constant 0 : i32
    return %arg0, %c0_i32 : i32, i32
  }
  func.func @transform_3(%arg0: i32) -> (i32, i32) {
    %c0_i32 = arith.constant 0 : i32
    %c0_i32_0 = arith.constant 0 : i32
    %c0_i32_1 = arith.constant 0 : i32
    return %c0_i32, %c0_i32_0 : i32, i32
  }
  func.func @transform_4(%arg0: i32) -> (i32, i32) {
    %c0_i32 = arith.constant 0 : i32
    %c0_i32_0 = arith.constant 0 : i32
    %c0_i32_1 = arith.constant 0 : i32
    return %c0_i32, %c0_i32_0 : i32, i32
  }
  func.func @transform_5(%arg0: i32) -> (i32, i32) {
    %c0_i32 = arith.constant 0 : i32
    %c0_i32_0 = arith.constant 0 : i32
    %c0_i32_1 = arith.constant 0 : i32
    return %c0_i32, %c0_i32_0 : i32, i32
  }
  func.func @transform_6(%arg0: i32) -> (i32, i32) {
    %c0_i32 = arith.constant 0 : i32
    %c0_i32_0 = arith.constant 0 : i32
    %c0_i32_1 = arith.constant 0 : i32
    return %c0_i32, %c0_i32_0 : i32, i32
  }
  func.func @transform_7(%arg0: i32) -> (i32, i32) {
    %c0_i32 = arith.constant 0 : i32
    %c0_i32_0 = arith.constant 0 : i32
    %c0_i32_1 = arith.constant 0 : i32
    return %c0_i32, %c0_i32_0 : i32, i32
  }
  func.func @transform_8(%arg0: i32) -> (i32, i32, i32) {
    %c0_i32 = arith.constant 0 : i32
    %c0_i32_0 = arith.constant 0 : i32
    %c0_i32_1 = arith.constant 0 : i32
    return %arg0, %c0_i32, %c0_i32_0 : i32, i32, i32
  }
  func.func @transform_9(%arg0: i32) -> (i32, i32, i32) {
    %c0_i32 = arith.constant 0 : i32
    %c0_i32_0 = arith.constant 0 : i32
    %c0_i32_1 = arith.constant 0 : i32
    return %arg0, %c0_i32, %c0_i32_0 : i32, i32, i32
  }
}

</mosaic_0001>

<llo_original>
// kernel: tpu_custom_call.1
$region0: #{tpu_custom_call.1}
  #allocation0 [shape = 'u32[]', space=smem, size = 0x4, offset = 0x4, fixed_abs, tag = 'smem constant byte address 0x4 - core index']
  #allocation1 [shape = 'u32[72,128]{1,0:T(1,128)}', space=vmem, size = 0x9000, scoped, tag = 'internal scratch']
  #allocation2 [shape = 'f32[1,1]{1,0:T(1,128)S(1)}', space=vmem, size = 0x200, scoped, tag = 'scoped memory for tpu_custom_call.1']
  %s0 = inlined_call_operand.vmem [shape: f32[64,32], index: 0, kind: input, shape index: {}]
  %s1 = inlined_call_operand.vmem [shape: f32[64,1], index: 1, kind: input, shape index: {}]
  %s2 = inlined_call_operand.vmem [shape: f32[64,1], index: 2, kind: input, shape index: {}]
  %s3 = inlined_call_operand.vmem [shape: f32[32,64], index: 3, kind: input, shape index: {}]
  %s4 = inlined_call_operand.vmem [shape: f32[1,64], index: 4, kind: input, shape index: {}]
  %s5 = inlined_call_operand.vmem [shape: f32[64,8], index: 5, kind: input, shape index: {}]
  %s6 = inlined_call_operand.vmem [shape: f32[32,1], index: 6, kind: input, shape index: {}]
  %s7 = inlined_call_operand.<no memory space> [shape: f32[1,1], index: 7, kind: input, shape index: {}]
  %s8 = inlined_call_operand.hbm [shape: f32[2,2,8], index: 8, kind: output, shape index: {0}]
  %s9 = inlined_call_operand.hbm [shape: f32[2,2,8], index: 9, kind: output, shape index: {1}]
  %10 = xla_tuple %s8, %s9
  %s11 = sld [smem:[#allocation0]]
  $region73: #{tpu_custom_call.1} parent=0
    _
  %s13 = ssub.s32 1, %s11
  %s14 = scalar_select 0, %s13, %s11
  %v15 = vstv %s7
  %16 = vst [vmem:[#allocation2] sm:$0x1] %v15
  $region1: #{tpu_custom_call.1} parent=0
    #allocation3 [shape = 'u8[2048]{0}', space=vmem, size = 0x800, scoped, tag = 'output window, operand 0']
    #allocation4 [shape = 's32[2]{0}', space=sflag, size = 0x8, scoped, tag = 'scoped memory for tpu_custom_call.1']
    #allocation5 [shape = 'u8[2048]{0}', space=vmem, size = 0x800, scoped, tag = 'output window, operand 1']
    #allocation6 [shape = 's32[2]{0}', space=sflag, size = 0x8, scoped, tag = 'scoped memory for tpu_custom_call.1']
    %17 = vsyncpa [#allocation4], 0
    %s18 = scalar_lea.sflag [#allocation4], 1
    %19 = vsyncpa %s18, 0
    %20 = vsyncpa [#allocation6], 0
    %s21 = scalar_lea.sflag [#allocation6], 1
    %22 = vsyncpa %s21, 0
    loop: start=0, step=1, limit=4
    $region2: #{tpu_custom_call.1} parent=1 // loop_pre_header
      _
    $region3: #{tpu_custom_call.1} parent=1 // loop_header
      %s24 = sphi 0, %s28
      %p25 = scmp.ge.s32.totalorder %s24, 4
      %s34 = sphi 0, %s36
      %s37 = sphi 0, %s34
      %s38 = sphi 0, %s37
      %s54 = sphi 0, %s38
      %s60 = sphi 0, %s62
      %s63 = sphi 0, %s60
      %s64 = sphi 0, %s63
      %s80 = sphi 0, %s64
      %s86 = sphi 0, %s88
      %s89 = sphi 0, %s86
      %s90 = sphi 0, %s89
      %s106 = sphi 0, %s90
      %s110 = sphi 0, %s110
      %s112 = sphi 0, %s110
      %s113 = sphi 0, %s112
      %s127 = sphi 0, %s113
      %s131 = sphi 0, %s131
      %s133 = sphi 0, %s131
      %s134 = sphi 0, %s133
      %s148 = sphi 0, %s134
      %s152 = sphi 0, %s152
      %s154 = sphi 0, %s152
      %s155 = sphi 0, %s154
      %s169 = sphi 0, %s155
      %s173 = sphi 0, %s173
      %s175 = sphi 0, %s173
      %s176 = sphi 0, %s175
      %s190 = sphi 0, %s176
      %s194 = sphi 0, %s194
      %s196 = sphi 0, %s194
      %s197 = sphi 0, %s196
      %s211 = sphi 0, %s197
      %s217 = sphi 0, %s219
      %s220 = sphi 0, %s217
      %s221 = sphi 0, %s220
      %s237 = sphi 0, %s221
      %s243 = sphi 0, %s245
      %s246 = sphi 0, %s243
      %s247 = sphi 0, %s246
      %s263 = sphi 0, %s247
    $region4: #{tpu_custom_call.1} parent=1 // loop_header_branch
      %27 = sbr.rel (%p25) target = $region8
    $region5: #{tpu_custom_call.1} parent=1 // loop_body
      %s29 = ssub.s32 %s24, 1
      %s30 = ssub.s32 %s24, 2
      %s31 = sadd.s32 %s24, 1
      %s32 = ssub.s32 %s24, %s31
      %p33 = scmp.eq.s32.totalorder %s32, 0
      %s35 = sadd.s32 %s34, 1
      %s36 = scalar_select %p33, %s34, %s35
      %p39 = pneg %p33
      %p40 = scmp.eq.s32.totalorder %s24, 1
      %p41 = por %p39, %p40
      %p42 = scmp.ne.s32.totalorder %s34, %s37
      %p43 = scmp.eq.s32.totalorder %s24, 0
      %p44 = por %p42, %p43
      %p45 = scmp.ne.s32.totalorder %s34, %s37
      %p46 = scmp.eq.s32.totalorder %s29, 1
      %p47 = por %p45, %p46
      %p48 = scmp.ne.s32.totalorder %s37, %s38
      %p49 = scmp.eq.s32.totalorder %s29, 0
      %p50 = por %p48, %p49
      %p51 = scmp.ne.s32.totalorder %s37, %s38
      %p52 = scmp.eq.s32.totalorder %s30, 1
      %p53 = por %p51, %p52
      %p55 = scmp.ne.s32.totalorder %s38, %s54
      %p56 = scmp.eq.s32.totalorder %s30, 0
      %p57 = por %p55, %p56
      %s58 = ssub.s32 %s24, %s31
      %p59 = scmp.eq.s32.totalorder %s58, 0
      %s61 = sadd.s32 %s60, 1
      %s62 = scalar_select %p59, %s60, %s61
      %p65 = pneg %p59
      %p66 = scmp.eq.s32.totalorder %s24, 1
      %p67 = por %p65, %p66
      %p68 = scmp.ne.s32.totalorder %s60, %s63
      %p69 = scmp.eq.s32.totalorder %s24, 0
      %p70 = por %p68, %p69
      %p71 = scmp.ne.s32.totalorder %s60, %s63
      %p72 = scmp.eq.s32.totalorder %s29, 1
      %p73 = por %p71, %p72
      %p74 = scmp.ne.s32.totalorder %s63, %s64
      %p75 = scmp.eq.s32.totalorder %s29, 0
      %p76 = por %p74, %p75
      %p77 = scmp.ne.s32.totalorder %s63, %s64
      %p78 = scmp.eq.s32.totalorder %s30, 1
      %p79 = por %p77, %p78
      %p81 = scmp.ne.s32.totalorder %s64, %s80
      %p82 = scmp.eq.s32.totalorder %s30, 0
      %p83 = por %p81, %p82
      %s84 = ssub.s32 %s24, %s31
      %p85 = scmp.eq.s32.totalorder %s84, 0
      %s87 = sadd.s32 %s86, 1
      %s88 = scalar_select %p85, %s86, %s87
      %p91 = pneg %p85
      %p92 = scmp.eq.s32.totalorder %s24, 1
      %p93 = por %p91, %p92
      %p94 = scmp.ne.s32.totalorder %s86, %s89
      %p95 = scmp.eq.s32.totalorder %s24, 0
      %p96 = por %p94, %p95
      %p97 = scmp.ne.s32.totalorder %s86, %s89
      %p98 = scmp.eq.s32.totalorder %s29, 1
      %p99 = por %p97, %p98
      %p100 = scmp.ne.s32.totalorder %s89, %s90
      %p101 = scmp.eq.s32.totalorder %s29, 0
      %p102 = por %p100, %p101
      %p103 = scmp.ne.s32.totalorder %s89, %s90
      %p104 = scmp.eq.s32.totalorder %s30, 1
      %p105 = por %p103, %p104
      %p107 = scmp.ne.s32.totalorder %s90, %s106
      %p108 = scmp.eq.s32.totalorder %s30, 0
      %p109 = por %p107, %p108
      %s111 = sadd.s32 %s110, 1
      %p114 = scmp.eq.s32.totalorder %s24, 1
      %p115 = scmp.ne.s32.totalorder %s110, %s112
      %p116 = scmp.eq.s32.totalorder %s24, 0
      %p117 = por %p115, %p116
      %p118 = scmp.ne.s32.totalorder %s110, %s112
      %p119 = scmp.eq.s32.totalorder %s29, 1
      %p120 = por %p118, %p119
      %p121 = scmp.ne.s32.totalorder %s112, %s113
      %p122 = scmp.eq.s32.totalorder %s29, 0
      %p123 = por %p121, %p122
      %p124 = scmp.ne.s32.totalorder %s112, %s113
      %p125 = scmp.eq.s32.totalorder %s30, 1
      %p126 = por %p124, %p125
      %p128 = scmp.ne.s32.totalorder %s113, %s127
      %p129 = scmp.eq.s32.totalorder %s30, 0
      %p130 = por %p128, %p129
      %s132 = sadd.s32 %s131, 1
      %p135 = scmp.eq.s32.totalorder %s24, 1
      %p136 = scmp.ne.s32.totalorder %s131, %s133
      %p137 = scmp.eq.s32.totalorder %s24, 0
      %p138 = por %p136, %p137
      %p139 = scmp.ne.s32.totalorder %s131, %s133
      %p140 = scmp.eq.s32.totalorder %s29, 1
      %p141 = por %p139, %p140
      %p142 = scmp.ne.s32.totalorder %s133, %s134
      %p143 = scmp.eq.s32.totalorder %s29, 0
      %p144 = por %p142, %p143
      %p145 = scmp.ne.s32.totalorder %s133, %s134
      %p146 = scmp.eq.s32.totalorder %s30, 1
      %p147 = por %p145, %p146
      %p149 = scmp.ne.s32.totalorder %s134, %s148
      %p150 = scmp.eq.s32.totalorder %s30, 0
      %p151 = por %p149, %p150
      %s153 = sadd.s32 %s152, 1
      %p156 = scmp.eq.s32.totalorder %s24, 1
      %p157 = scmp.ne.s32.totalorder %s152, %s154
      %p158 = scmp.eq.s32.totalorder %s24, 0
      %p159 = por %p157, %p158
      %p160 = scmp.ne.s32.totalorder %s152, %s154
      %p161 = scmp.eq.s32.totalorder %s29, 1
      %p162 = por %p160, %p161
      %p163 = scmp.ne.s32.totalorder %s154, %s155
      %p164 = scmp.eq.s32.totalorder %s29, 0
      %p165 = por %p163, %p164
      %p166 = scmp.ne.s32.totalorder %s154, %s155
      %p167 = scmp.eq.s32.totalorder %s30, 1
      %p168 = por %p166, %p167
      %p170 = scmp.ne.s32.totalorder %s155, %s169
      %p171 = scmp.eq.s32.totalorder %s30, 0
      %p172 = por %p170, %p171
      %s174 = sadd.s32 %s173, 1
      %p177 = scmp.eq.s32.totalorder %s24, 1
      %p178 = scmp.ne.s32.totalorder %s173, %s175
      %p179 = scmp.eq.s32.totalorder %s24, 0
      %p180 = por %p178, %p179
      %p181 = scmp.ne.s32.totalorder %s173, %s175
      %p182 = scmp.eq.s32.totalorder %s29, 1
      %p183 = por %p181, %p182
      %p184 = scmp.ne.s32.totalorder %s175, %s176
      %p185 = scmp.eq.s32.totalorder %s29, 0
      %p186 = por %p184, %p185
      %p187 = scmp.ne.s32.totalorder %s175, %s176
      %p188 = scmp.eq.s32.totalorder %s30, 1
      %p189 = por %p187, %p188
      %p191 = scmp.ne.s32.totalorder %s176, %s190
      %p192 = scmp.eq.s32.totalorder %s30, 0
      %p193 = por %p191, %p192
      %s195 = sadd.s32 %s194, 1
      %p198 = scmp.eq.s32.totalorder %s24, 1
      %p199 = scmp.ne.s32.totalorder %s194, %s196
      %p200 = scmp.eq.s32.totalorder %s24, 0
      %p201 = por %p199, %p200
      %p202 = scmp.ne.s32.totalorder %s194, %s196
      %p203 = scmp.eq.s32.totalorder %s29, 1
      %p204 = por %p202, %p203
      %p205 = scmp.ne.s32.totalorder %s196, %s197
      %p206 = scmp.eq.s32.totalorder %s29, 0
      %p207 = por %p205, %p206
      %p208 = scmp.ne.s32.totalorder %s196, %s197
      %p209 = scmp.eq.s32.totalorder %s30, 1
      %p210 = por %p208, %p209
      %p212 = scmp.ne.s32.totalorder %s197, %s211
      %p213 = scmp.eq.s32.totalorder %s30, 0
      %p214 = por %p212, %p213
      %s215 = ssub.s32 %s24, %s31
      %p216 = scmp.eq.s32.totalorder %s215, 0
      %s218 = sadd.s32 %s217, 1
      %s219 = scalar_select %p216, %s217, %s218
      %p222 = pneg %p216
      %p223 = scmp.eq.s32.totalorder %s24, 1
      %p224 = por %p222, %p223
      %p225 = scmp.ne.s32.totalorder %s217, %s220
      %p226 = scmp.eq.s32.totalorder %s24, 0
      %p227 = por %p225, %p226
      %p228 = scmp.ne.s32.totalorder %s217, %s220
      %p229 = scmp.eq.s32.totalorder %s29, 1
      %p230 = por %p228, %p229
      %p231 = scmp.ne.s32.totalorder %s220, %s221
      %p232 = scmp.eq.s32.totalorder %s29, 0
      %p233 = por %p231, %p232
      %p234 = scmp.ne.s32.totalorder %s220, %s221
      %p235 = scmp.eq.s32.totalorder %s30, 1
      %p236 = por %p234, %p235
      %p238 = scmp.ne.s32.totalorder %s221, %s237
      %p239 = scmp.eq.s32.totalorder %s30, 0
      %p240 = por %p238, %p239
      %s241 = ssub.s32 %s24, %s31
      %p242 = scmp.eq.s32.totalorder %s241, 0
      %s244 = sadd.s32 %s243, 1
      %s245 = scalar_select %p242, %s243, %s244
      %p248 = pneg %p242
      %p249 = scmp.eq.s32.totalorder %s24, 1
      %p250 = por %p248, %p249
      %p251 = scmp.ne.s32.totalorder %s243, %s246
      %p252 = scmp.eq.s32.totalorder %s24, 0
      %p253 = por %p251, %p252
      %p254 = scmp.ne.s32.totalorder %s243, %s246
      %p255 = scmp.eq.s32.totalorder %s29, 1
      %p256 = por %p254, %p255
      %p257 = scmp.ne.s32.totalorder %s246, %s247
      %p258 = scmp.eq.s32.totalorder %s29, 0
      %p259 = por %p257, %p258
      %p260 = scmp.ne.s32.totalorder %s246, %s247
      %p261 = scmp.eq.s32.totalorder %s30, 1
      %p262 = por %p260, %p261
      %p264 = scmp.ne.s32.totalorder %s247, %s263
      %p265 = scmp.eq.s32.totalorder %s30, 0
      %p266 = por %p264, %p265
      %p267 = scmp.le.s32.totalorder 1, %s24
      %p268 = scmp.lt.s32.totalorder %s24, 3
      %p269 = pnand %p267, %p268
      %p270 = pneg %p269
      // Predicated region
      $region9: #{tpu_custom_call.1} parent=5 // pred_check
        _
      $region10: #{tpu_custom_call.1} parent=5 // pred_check_branch
        %272 = sbr.rel (%p269) target = $region12
      $region11: #{tpu_custom_call.1} parent=5 // pred_region
        %s273 = ssub.s32 %s24, 1
        // Predicated region
        $region13: #{tpu_custom_call.1} parent=11 // pred_check
          %p274 = pneg %p123
        $region14: #{tpu_custom_call.1} parent=11 // pred_check_branch
          %276 = sbr.rel (%p274) target = $region16
        $region15: #{tpu_custom_call.1} parent=11 // pred_region
          _
        $region16: #{tpu_custom_call.1} parent=11 // pred_fallthru
          _
        // Predicated region
        $region17: #{tpu_custom_call.1} parent=11 // pred_check
          %p277 = pneg %p144
        $region18: #{tpu_custom_call.1} parent=11 // pred_check_branch
          %279 = sbr.rel (%p277) target = $region20
        $region19: #{tpu_custom_call.1} parent=11 // pred_region
          _
        $region20: #{tpu_custom_call.1} parent=11 // pred_fallthru
          _
        // Predicated region
        $region21: #{tpu_custom_call.1} parent=11 // pred_check
          %p280 = pneg %p165
        $region22: #{tpu_custom_call.1} parent=11 // pred_check_branch
          %282 = sbr.rel (%p280) target = $region24
        $region23: #{tpu_custom_call.1} parent=11 // pred_region
          _
        $region24: #{tpu_custom_call.1} parent=11 // pred_fallthru
          _
        // Predicated region
        $region25: #{tpu_custom_call.1} parent=11 // pred_check
          %p283 = pneg %p186
        $region26: #{tpu_custom_call.1} parent=11 // pred_check_branch
          %285 = sbr.rel (%p283) target = $region28
        $region27: #{tpu_custom_call.1} parent=11 // pred_region
          _
        $region28: #{tpu_custom_call.1} parent=11 // pred_fallthru
          _
        // Predicated region
        $region29: #{tpu_custom_call.1} parent=11 // pred_check
          %p286 = pneg %p207
        $region30: #{tpu_custom_call.1} parent=11 // pred_check_branch
          %288 = sbr.rel (%p286) target = $region32
        $region31: #{tpu_custom_call.1} parent=11 // pred_region
          _
        $region32: #{tpu_custom_call.1} parent=11 // pred_fallthru
          _
      $region12: #{tpu_custom_call.1} parent=5 // pred_fallthru
        _
      %p289 = scmp.lt.s32.totalorder %s24, 2
      // Predicated region
      $region33: #{tpu_custom_call.1} parent=5 // pred_check
        %p290 = pneg %p289
      $region34: #{tpu_custom_call.1} parent=5 // pred_check_branch
        %292 = sbr.rel (%p290) target = $region36
      $region35: #{tpu_custom_call.1} parent=5 // pred_region
        // Predicated region
        $region37: #{tpu_custom_call.1} parent=35 // pred_check
          %p293 = pneg %p44
        $region38: #{tpu_custom_call.1} parent=35 // pred_check_branch
          %295 = sbr.rel (%p293) target = $region40
        $region39: #{tpu_custom_call.1} parent=35 // pred_region
          %s296 = smul.u32 4, %s24
          %p297 = scmp.lt.s32.totalorder %s296, 7
          %s298 = scalar_select %p297, %s296, 7
          %s299 = smul.addr %s298, 8
          %s300 = scalar_lea.vmem %s0, %s299
          %s301 = smul.u32 4, %s24
        $region40: #{tpu_custom_call.1} parent=35 // pred_fallthru
          _
        // Predicated region
        $region41: #{tpu_custom_call.1} parent=35 // pred_check
          %p302 = pneg %p70
        $region42: #{tpu_custom_call.1} parent=35 // pred_check_branch
          %304 = sbr.rel (%p302) target = $region44
        $region43: #{tpu_custom_call.1} parent=35 // pred_region
          %s305 = smul.u32 4, %s24
          %p306 = scmp.lt.s32.totalorder %s305, 7
          %s307 = scalar_select %p306, %s305, 7
          %s308 = smul.addr %s307, 8
          %s309 = scalar_lea.vmem %s1, %s308
          %s310 = smul.u32 4, %s24
        $region44: #{tpu_custom_call.1} parent=35 // pred_fallthru
          _
        // Predicated region
        $region45: #{tpu_custom_call.1} parent=35 // pred_check
          %p311 = pneg %p96
        $region46: #{tpu_custom_call.1} parent=35 // pred_check_branch
          %313 = sbr.rel (%p311) target = $region48
        $region47: #{tpu_custom_call.1} parent=35 // pred_region
          %s314 = smul.u32 4, %s24
          %p315 = scmp.lt.s32.totalorder %s314, 7
          %s316 = scalar_select %p315, %s314, 7
          %s317 = smul.addr %s316, 8
          %s318 = scalar_lea.vmem %s2, %s317
          %s319 = smul.u32 4, %s24
        $region48: #{tpu_custom_call.1} parent=35 // pred_fallthru
          _
      $region36: #{tpu_custom_call.1} parent=5 // pred_fallthru
        _
      %p320 = scmp.le.s32.totalorder 1, %s24
      %p321 = scmp.lt.s32.totalorder %s24, 3
      %p322 = pnand %p320, %p321
      %p323 = pneg %p322
      // Predicated region
      $region49: #{tpu_custom_call.1} parent=5 // pred_check
        _
      $region50: #{tpu_custom_call.1} parent=5 // pred_check_branch
        %325 = sbr.rel (%p322) target = $region52
      $region51: #{tpu_custom_call.1} parent=5 // pred_region
        %s326 = ssub.s32 %s24, 1
        %s327 = smul.u32 4, %s29
        %p328 = scmp.lt.s32.totalorder %s327, 7
        %s329 = scalar_select %p328, %s327, 7
        %s330 = smul.addr %s329, 8
        %s331 = scalar_lea.vmem %s0, %s330
        %p332 = pneg %p50
        %p333 = pneg %p47
        %s334 = smul.u32 4, %s29
        %p335 = scmp.lt.s32.totalorder %s334, 7
        %s336 = scalar_select %p335, %s334, 7
        %s337 = smul.addr %s336, 8
        %s338 = scalar_lea.vmem %s1, %s337
        %p339 = pneg %p76
        %p340 = pneg %p73
        %s341 = smul.u32 4, %s29
        %p342 = scmp.lt.s32.totalorder %s341, 7
        %s343 = scalar_select %p342, %s341, 7
        %s344 = smul.addr %s343, 8
        %s345 = scalar_lea.vmem %s2, %s344
        %p346 = pneg %p102
        %p347 = pneg %p99
        %p348 = pneg %p123
        %p349 = pneg %p120
        %p350 = pneg %p144
        %p351 = pneg %p141
        %p352 = pneg %p165
        %p353 = pneg %p162
        %p354 = pneg %p186
        %p355 = pneg %p183
        %p356 = pneg %p207
        %p357 = pneg %p204
        %p358 = pneg %p233
        %p359 = pneg %p230
        %s360 = sand.u32 %s220, 1
        %s361 = scalar_lea.sflag [#allocation4], %s360
        %s362 = sand.u32 %s220, 1
        %s363 = smul.addr %s362, 2
        %s364 = scalar_lea.vmem [#allocation3], %s363
        %p365 = pneg %p259
        %p366 = pneg %p256
        %s367 = sand.u32 %s246, 1
        %s368 = scalar_lea.sflag [#allocation6], %s367
        %s369 = sand.u32 %s246, 1
        %s370 = smul.addr %s369, 2
        %s371 = scalar_lea.vmem [#allocation5], %s370
        %s372 = smul.u32 4, %s29
        %p373 = scmp.lt.s32.totalorder %s372, 7
        %s374 = scalar_select %p373, %s372, 7
        %s375 = smul.addr %s374, 8
        %s376 = scalar_lea.vmem %s0, %s375
        %s377 = smul.u32 4, %s29
        %s378 = smul.u32 4, %s29
        %p379 = scmp.lt.s32.totalorder %s378, 7
        %s380 = scalar_select %p379, %s378, 7
        %s381 = smul.addr %s380, 8
        %s382 = scalar_lea.vmem %s1, %s381
        %s383 = smul.u32 4, %s29
        %s384 = smul.u32 4, %s29
        %p385 = scmp.lt.s32.totalorder %s384, 7
        %s386 = scalar_select %p385, %s384, 7
        %s387 = smul.addr %s386, 8
        %s388 = scalar_lea.vmem %s2, %s387
        %s389 = smul.u32 4, %s29
        %v390 = vld [vmem:[%s376] sm:$0xff]
        %v391 = vld [vmem:[%s376 + $0x8] sm:$0xff]
        %v392 = vld [vmem:[%s376 + $0x10] sm:$0xff]
        %v393 = vld [vmem:[%s376 + $0x18] sm:$0xff]
        %v394 = vld [vmem:[%s3] sm:$0xff]
        %v395 = vld [vmem:[%s3 + $0x8] sm:$0xff]
        %v396 = vld [vmem:[%s3 + $0x10] sm:$0xff]
        %v397 = vld [vmem:[%s3 + $0x18] sm:$0xff]
        %v398 = vld [vmem:[%s4] sm:$0x1]
        %v400 = vperm.slane %v398, 0
        %vm402 = vcmask 261120
        %v404 = vsel %vm402, %v390, 0
        %v407 = vsel %vm402, %v391, 0
        %v410 = vsel %vm402, %v392, 0
        %v413 = vsel %vm402, %v393, 0
        %415 = vmatpush.msra.mxu0 0.0
        %416 = vmatpush.msra.mxu0 0.0
        %417 = vmatpush.msra.mxu0 0.0
        %418 = vmatpush.msra.mxu0 0.0
        %419 = vmatpush.msra.mxu0 0.0
        %420 = vmatpush.msra.mxu0 0.0
        %421 = vmatpush.msra.mxu0 0.0
        %422 = vmatpush.msra.mxu0 0.0
        %423 = vmatpush.msra.mxu0 0.0
        %424 = vmatpush.msra.mxu0 0.0
        %425 = vmatpush.msra.mxu0 0.0
        %426 = vmatpush.msra.mxu0 0.0
        %427 = vmatpush.msra.mxu0 %v397
        %428 = vmatpush.msra.mxu0 %v396
        %429 = vmatpush.msra.mxu0 %v395
        %430 = vmatpush.msra.mxu0 %v394
        %431 = vmatmul.f32.gmra.mxu0 %v404
        %v432 = vpop.f32.mrf.mxu0
        %v433 = vadd.f32 %v400, %v432
        %434 = vmatmul.f32.gmra.mxu0 %v407
        %v435 = vpop.f32.mrf.mxu0
        %v436 = vadd.f32 %v400, %v435
        %437 = vmatmul.f32.gmra.mxu0 %v410
        %v438 = vpop.f32.mrf.mxu0
        %v439 = vadd.f32 %v400, %v438
        %440 = vmatmul.f32.gmra.mxu0 %v413
        %v441 = vpop.f32.mrf.mxu0
        %v442 = vadd.f32 %v400, %v441
        %443 = vdwg.mxu0
        %v444 = vtanh.pop %v433
        %v445 = vtanh.pop %v436
        %v446 = vtanh.pop %v439
        %v447 = vtanh.pop %v442
        %v448 = vld [vmem:[%s5] sm:$0xff]
        %v449 = vld [vmem:[%s5 + $0x8] sm:$0xff]
        %v450 = vld [vmem:[%s5 + $0x10] sm:$0xff]
        %v451 = vld [vmem:[%s5 + $0x18] sm:$0xff]
        %v452 = vld [vmem:[%s5 + $0x20] sm:$0xff]
        %v453 = vld [vmem:[%s5 + $0x28] sm:$0xff]
        %v454 = vld [vmem:[%s5 + $0x30] sm:$0xff]
        %v455 = vld [vmem:[%s5 + $0x38] sm:$0xff]
        %vm456 = vcmask 523264
        %v458 = vsel %vm456, %v444, 0
        %v461 = vsel %vm456, %v445, 0
        %v464 = vsel %vm456, %v446, 0
        %v467 = vsel %vm456, %v447, 0
        %469 = vmatpush.msra.mxu0 0.0
        %470 = vmatpush.msra.mxu0 0.0
        %471 = vmatpush.msra.mxu0 0.0
        %472 = vmatpush.msra.mxu0 0.0
        %473 = vmatpush.msra.mxu0 0.0
        %474 = vmatpush.msra.mxu0 0.0
        %475 = vmatpush.msra.mxu0 0.0
        %476 = vmatpush.msra.mxu0 0.0
        %477 = vmatpush.msra.mxu0 %v455
        %478 = vmatpush.msra.mxu0 %v454
        %479 = vmatpush.msra.mxu0 %v453
        %480 = vmatpush.msra.mxu0 %v452
        %481 = vmatpush.msra.mxu0 %v451
        %482 = vmatpush.msra.mxu0 %v450
        %483 = vmatpush.msra.mxu0 %v449
        %484 = vmatpush.msra.mxu0 %v448
        %485 = vmatmul.f32.gmra.mxu0 %v458
        %v486 = vpop.f32.mrf.mxu0
        %v487 = vadd.f32 0.0, %v486
        %488 = vmatmul.f32.gmra.mxu0 %v461
        %v489 = vpop.f32.mrf.mxu0
        %v490 = vadd.f32 0.0, %v489
        %491 = vmatmul.f32.gmra.mxu0 %v464
        %v492 = vpop.f32.mrf.mxu0
        %v493 = vadd.f32 0.0, %v492
        %494 = vmatmul.f32.gmra.mxu0 %v467
        %v495 = vpop.f32.mrf.mxu0
        %v496 = vadd.f32 0.0, %v495
        %497 = vdwg.mxu0
        %v498 = vld [vmem:[%s382] sm:$0xff]
        %v499 = vld [vmem:[%s382 + $0x8] sm:$0xff]
        %v500 = vld [vmem:[%s382 + $0x10] sm:$0xff]
        %v501 = vld [vmem:[%s382 + $0x18] sm:$0xff]
        %503 = vset.pattern.permute.xlu0 0
        %504 = vperm.xlu0 %503, %v498
        %v505 = vpop.permute.xlu0 %504
        %508 = vset.pattern.permute.xlu0 0
        %509 = vperm.xlu0 %508, %v499
        %v510 = vpop.permute.xlu0 %509
        %513 = vset.pattern.permute.xlu0 0
        %514 = vperm.xlu0 %513, %v500
        %v515 = vpop.permute.xlu0 %514
        %518 = vset.pattern.permute.xlu0 0
        %519 = vperm.xlu0 %518, %v501
        %v520 = vpop.permute.xlu0 %519
        %v522 = vmul.f32 %v505, %v487
        %v523 = vmul.f32 %v510, %v490
        %v524 = vmul.f32 %v515, %v493
        %v525 = vmul.f32 %v520, %v496
        %v526 = vld [vmem:[%s388] sm:$0xff]
        %v527 = vld [vmem:[%s388 + $0x8] sm:$0xff]
        %v528 = vld [vmem:[%s388 + $0x10] sm:$0xff]
        %v529 = vld [vmem:[%s388 + $0x18] sm:$0xff]
        %531 = vset.pattern.permute.xlu0 0
        %532 = vperm.xlu0 %531, %v526
        %v533 = vpop.permute.xlu0 %532
        %536 = vset.pattern.permute.xlu0 0
        %537 = vperm.xlu0 %536, %v527
        %v538 = vpop.permute.xlu0 %537
        %541 = vset.pattern.permute.xlu0 0
        %542 = vperm.xlu0 %541, %v528
        %v543 = vpop.permute.xlu0 %542
        %546 = vset.pattern.permute.xlu0 0
        %547 = vperm.xlu0 %546, %v529
        %v548 = vpop.permute.xlu0 %547
        %v550 = vadd.f32 %v522, %v533
        %v551 = vadd.f32 %v523, %v538
        %v552 = vadd.f32 %v524, %v543
        %v553 = vadd.f32 %v525, %v548
        %vm554 = vcmask 64512
        %v555 = vsel %vm554, %v550, -inf
        %v556 = vsel %vm554, %v551, -inf
        %v557 = vmax.f32 %v555, %v556
        %v558 = vrot.slane %v557, 4
        %v559 = vmax.f32 %v557, %v558
        %v560 = vrot.slane %v559, 2
        %v561 = vmax.f32 %v559, %v560
        %v562 = vrot.slane %v561, 1
        %v563 = vmax.f32 %v561, %v562
        %v564 = vsel %vm554, %v552, -inf
        %v565 = vsel %vm554, %v553, -inf
        %v566 = vmax.f32 %v564, %v565
        %v567 = vrot.slane %v566, 4
        %v568 = vmax.f32 %v566, %v567
        %v569 = vrot.slane %v568, 2
        %v570 = vmax.f32 %v568, %v569
        %v571 = vrot.slane %v570, 1
        %v572 = vmax.f32 %v570, %v571
        %v573 = vsub.f32 %v550, %v563
        %v574 = vsub.f32 %v551, %v563
        %v575 = vsub.f32 %v552, %v572
        %v576 = vsub.f32 %v553, %v572
        %v577 = vmul.f32 %v573, 1.442695
        %v578 = vpow.pop %v577
        %v579 = vmul.f32 %v574, 1.442695
        %v580 = vpow.pop %v579
        %v581 = vmul.f32 %v575, 1.442695
        %v582 = vpow.pop %v581
        %v583 = vmul.f32 %v576, 1.442695
        %v584 = vpow.pop %v583
        %v585 = vsel %vm554, %v578, 0.0
        %v586 = vsel %vm554, %v580, 0.0
        %v587 = vadd.f32 %v585, %v586
        %v588 = vrot.slane %v587, 4
        %v589 = vadd.f32 %v587, %v588
        %v590 = vrot.slane %v589, 2
        %v591 = vadd.f32 %v589, %v590
        %v592 = vrot.slane %v591, 1
        %v593 = vadd.f32 %v591, %v592
        %v594 = vsel %vm554, %v582, 0.0
        %v595 = vsel %vm554, %v584, 0.0
        %v596 = vadd.f32 %v594, %v595
        %v597 = vrot.slane %v596, 4
        %v598 = vadd.f32 %v596, %v597
        %v599 = vrot.slane %v598, 2
        %v600 = vadd.f32 %v598, %v599
        %v601 = vrot.slane %v600, 1
        %v602 = vadd.f32 %v600, %v601
        %v603 = vrcp.pop %v593
        %v604 = vmul.f32 %v593, %v603
        %v605 = vsub.f32 1.0, %v604
        %v606 = vmul.f32 %v603, %v605
        %v607 = vadd.f32 %v603, %v606
        %vm608 = vweird.f32 %v593
        %vm609 = vweird.f32 %v603
        %vm610 = vmor %vm608, %vm609
        %v611 = vsel %vm610, %v603, %v607
        %v612 = vand.u32 2147483647, %v593
        %vm613 = vcmp.eq.f32.partialorder %v612, 8.507059e+37
        %v614 = vand.u32 %v593, 2147483648
        %v615 = vor.u32 1.1754944e-38, %v614
        %v616 = vsel %vm613, %v615, %v611
        %v617 = vrcp.pop %v602
        %v618 = vmul.f32 %v602, %v617
        %v619 = vsub.f32 1.0, %v618
        %v620 = vmul.f32 %v617, %v619
        %v621 = vadd.f32 %v617, %v620
        %vm622 = vweird.f32 %v602
        %vm623 = vweird.f32 %v617
        %vm624 = vmor %vm622, %vm623
        %v625 = vsel %vm624, %v617, %v621
        %v626 = vand.u32 2147483647, %v602
        %vm627 = vcmp.eq.f32.partialorder %v626, 8.507059e+37
        %v628 = vand.u32 %v602, 2147483648
        %v629 = vor.u32 1.1754944e-38, %v628
        %v630 = vsel %vm627, %v629, %v625
        %v631 = vmul.f32 %v578, %v616
        %v632 = vmul.f32 %v580, %v616
        %v633 = vmul.f32 %v582, %v630
        %v634 = vmul.f32 %v584, %v630
        %v635 = vld [vmem:[%s6] sm:$0xff]
        %v636 = vld [vmem:[%s6 + $0x8] sm:$0xff]
        %v637 = vld [vmem:[%s6 + $0x10] sm:$0xff]
        %v638 = vld [vmem:[%s6 + $0x18] sm:$0xff]
        %639 = vmatpush.msra.mxu0 0.0
        %640 = vmatpush.msra.mxu0 0.0
        %641 = vmatpush.msra.mxu0 0.0
        %642 = vmatpush.msra.mxu0 0.0
        %643 = vmatpush.msra.mxu0 0.0
        %644 = vmatpush.msra.mxu0 0.0
        %645 = vmatpush.msra.mxu0 0.0
        %646 = vmatpush.msra.mxu0 0.0
        %647 = vmatpush.msra.mxu0 0.0
        %648 = vmatpush.msra.mxu0 0.0
        %649 = vmatpush.msra.mxu0 0.0
        %650 = vmatpush.msra.mxu0 0.0
        %651 = vmatpush.msra.mxu0 %v638
        %652 = vmatpush.msra.mxu0 %v637
        %653 = vmatpush.msra.mxu0 %v636
        %654 = vmatpush.msra.mxu0 %v635
        %655 = vmatmul.f32.gmra.mxu0 %v404
        %v656 = vpop.f32.mrf.mxu0
        %v657 = vadd.f32 0.0, %v656
        %658 = vmatmul.f32.gmra.mxu0 %v407
        %v659 = vpop.f32.mrf.mxu0
        %v660 = vadd.f32 0.0, %v659
        %661 = vmatmul.f32.gmra.mxu0 %v410
        %v662 = vpop.f32.mrf.mxu0
        %v663 = vadd.f32 0.0, %v662
        %664 = vmatmul.f32.gmra.mxu0 %v413
        %v665 = vpop.f32.mrf.mxu0
        %v666 = vadd.f32 0.0, %v665
        %667 = vdwg.mxu0
        %669 = vset.pattern.permute.xlu0 0
        %670 = vperm.xlu0 %669, %v657
        %v671 = vpop.permute.xlu0 %670
        %674 = vset.pattern.permute.xlu0 0
        %675 = vperm.xlu0 %674, %v660
        %v676 = vpop.permute.xlu0 %675
        %679 = vset.pattern.permute.xlu0 0
        %680 = vperm.xlu0 %679, %v663
        %v681 = vpop.permute.xlu0 %680
        %684 = vset.pattern.permute.xlu0 0
        %685 = vperm.xlu0 %684, %v666
        %v686 = vpop.permute.xlu0 %685
        %v688 = vmul.f32 %v631, %v671
        %v689 = vmul.f32 %v632, %v676
        %v690 = vmul.f32 %v633, %v681
        %v691 = vmul.f32 %v634, %v686
        %v692 = vsel %vm554, %v688, 0.0
        %v693 = vsel %vm554, %v689, 0.0
        %v694 = vadd.f32 %v692, %v693
        %v695 = vrot.slane %v694, 4
        %v696 = vadd.f32 %v694, %v695
        %v697 = vrot.slane %v696, 2
        %v698 = vadd.f32 %v696, %v697
        %v699 = vrot.slane %v698, 1
        %v700 = vadd.f32 %v698, %v699
        %v701 = vsel %vm554, %v690, 0.0
        %v702 = vsel %vm554, %v691, 0.0
        %v703 = vadd.f32 %v701, %v702
        %v704 = vrot.slane %v703, 4
        %v705 = vadd.f32 %v703, %v704
        %v706 = vrot.slane %v705, 2
        %v707 = vadd.f32 %v705, %v706
        %v708 = vrot.slane %v707, 1
        %v709 = vadd.f32 %v707, %v708
        %v710 = vld [vmem:[#allocation2] sm:$0x1]
        %v712 = vperm.slane %v710, 0
        %713 = vset.pattern.permute.xlu0 0
        %714 = vperm.xlu0 %713, %v712
        %v715 = vpop.permute.xlu0 %714
        %v717 = vadd.f32 %v700, %v715
        %v718 = vadd.f32 %v709, %v715
        %vm721 = vcmask 1041409
        %v722 = vsel %vm721, %v718, %v717
        %vm724 = vcmask 58368
        %725 = vst.msk [vmem:[%s364] sm:$0x3] %vm724, %v722
        %v726 = vsel %vm724, %v722, -inf
        %727 = vmax.xlane.f32.xlu0 %v726
        %v728 = vpop.xlane.xlu0 %727
        %v729 = vmax.f32 %v728, 0.0
        %v730 = vsub.f32 0.0, %v729
        %v731 = vmul.f32 %v730, 1.442695
        %v732 = vpow.pop %v731
        %v734 = vrot.slane %v729, 1
        %v737 = vsub.f32 %v717, %v729
        %v738 = vsub.f32 %v718, %v734
        %v739 = vmul.f32 %v737, 1.442695
        %v740 = vpow.pop %v739
        %v741 = vmul.f32 %v738, 1.442695
        %v742 = vpow.pop %v741
        %v745 = vrot.slane %v742, 7
        %v746 = vsel %vm721, %v745, %v740
        %v748 = vsel %vm724, %v746, 0.0
        %749 = vadd.xlane.f32.xlu0 %v748
        %v750 = vpop.xlane.xlu0 %749
        %v751 = vadd.f32 %v732, %v750
        %v752 = vrcp.pop %v751
        %v753 = vmul.f32 %v751, %v752
        %v754 = vsub.f32 1.0, %v753
        %v755 = vmul.f32 %v752, %v754
        %v756 = vadd.f32 %v752, %v755
        %vm757 = vweird.f32 %v751
        %vm758 = vweird.f32 %v752
        %vm759 = vmor %vm757, %vm758
        %v760 = vsel %vm759, %v752, %v756
        %v761 = vand.u32 2147483647, %v751
        %vm762 = vcmp.eq.f32.partialorder %v761, 8.507059e+37
        %v763 = vand.u32 %v751, 2147483648
        %v764 = vor.u32 1.1754944e-38, %v763
        %v765 = vsel %vm762, %v764, %v760
        %v766 = vmul.f32 %v732, %v765
        %v768 = vrot.slane %v765, 1
        %v771 = vmul.f32 %v740, %v765
        %v772 = vmul.f32 %v742, %v768
        %v773 = vlaneseq
        %v774 = vshrl.u32 %v773, 7
        %v775 = vlaneseq
        %v776 = vand.u32 %v775, 127
        %vm777 = vcmp.lt.s32.totalorder %v774, %v776
        %v778 = vsel %vm777, 1.0, 0.0
        %v781 = vrot.slane %v772, 7
        %v782 = vsel %vm721, %v781, %v771
        %v783 = vsel %vm554, %v782, 0
        %785 = vmatpush.msra.mxu0 0.0
        %786 = vmatpush.msra.mxu0 0.0
        %787 = vmatpush.msra.mxu0 0.0
        %788 = vmatpush.msra.mxu0 0.0
        %789 = vmatpush.msra.mxu0 0.0
        %790 = vmatpush.msra.mxu0 0.0
        %791 = vmatpush.msra.mxu0 0.0
        %792 = vmatpush.msra.mxu0 0.0
        %793 = vmatpush.msra.mxu0 0.0
        %794 = vmatpush.msra.mxu0 0.0
        %795 = vmatpush.msra.mxu0 0.0
        %796 = vmatpush.msra.mxu0 0.0
        %797 = vmatpush.msra.mxu0 0.0
        %798 = vmatpush.msra.mxu0 0.0
        %799 = vmatpush.msra.mxu0 0.0
        %800 = vmatpush.msra.mxu0 %v778
        %801 = vmatmul.f32.gmra.mxu0 %v783
        %v802 = vpop.f32.mrf.mxu0
        %v803 = vadd.f32 0.0, %v802
        %804 = vdwg.mxu0
        %v805 = vadd.f32 %v766, %v803
        %v806 = vmax.f32 %v805, 0.0001
        %v807 = vmin.f32 %v806, 0.9999
        %808 = vst.msk [vmem:[%s371] sm:$0x3] %vm724, %v807
        %s809 = sand.u32 %s220, 1
        %s810 = scalar_lea.sflag [#allocation4], %s809
        %s811 = sand.u32 %s220, 1
        %s812 = smul.addr %s811, 2
        %s813 = scalar_lea.vmem [#allocation3], %s812
        %s814 = sand.u32 %s246, 1
        %s815 = scalar_lea.sflag [#allocation6], %s814
        %s816 = sand.u32 %s246, 1
        %s817 = smul.addr %s816, 2
        %s818 = scalar_lea.vmem [#allocation5], %s817
        // Predicated region
        $region53: #{tpu_custom_call.1} parent=51 // pred_check
          %p819 = pneg %p230
        $region54: #{tpu_custom_call.1} parent=51 // pred_check_branch
          %821 = sbr.rel (%p819) target = $region56
        $region55: #{tpu_custom_call.1} parent=51 // pred_region
          %823 = vsyncadd %s810, 0
          %s824 = smul.addr %s29, 2
          %s825 = scalar_lea.hbm %s8, %s824
          %s827 = sshll.u32 %s813, 4
          %s828 = int_to_ptr.vmem [resolvable:$true] %s827
          %s829 = sshll.u32 %s825, 4
          %s830 = int_to_ptr.hbm [resolvable:$true] %s829
          %832 = dma.vmem_to_hbm [thread:$0]  %s828, 32, %s830, %s810
        $region56: #{tpu_custom_call.1} parent=51 // pred_fallthru
          _
        // Predicated region
        $region57: #{tpu_custom_call.1} parent=51 // pred_check
          %p833 = pneg %p256
        $region58: #{tpu_custom_call.1} parent=51 // pred_check_branch
          %835 = sbr.rel (%p833) target = $region60
        $region59: #{tpu_custom_call.1} parent=51 // pred_region
          %837 = vsyncadd %s815, 0
          %s838 = smul.addr %s29, 2
          %s839 = scalar_lea.hbm %s9, %s838
          %s841 = sshll.u32 %s818, 4
          %s842 = int_to_ptr.vmem [resolvable:$true] %s841
          %s843 = sshll.u32 %s839, 4
          %s844 = int_to_ptr.hbm [resolvable:$true] %s843
          %846 = dma.vmem_to_hbm [thread:$0]  %s842, 32, %s844, %s815
        $region60: #{tpu_custom_call.1} parent=51 // pred_fallthru
          _
      $region52: #{tpu_custom_call.1} parent=5 // pred_fallthru
        _
      %p847 = scmp.le.s32.totalorder 2, %s24
      // Predicated region
      $region61: #{tpu_custom_call.1} parent=5 // pred_check
        %p848 = pneg %p847
      $region62: #{tpu_custom_call.1} parent=5 // pred_check_branch
        %850 = sbr.rel (%p848) target = $region64
      $region63: #{tpu_custom_call.1} parent=5 // pred_region
        %s851 = ssub.s32 %s24, 2
        // Predicated region
        $region65: #{tpu_custom_call.1} parent=63 // pred_check
          %p852 = pneg %p236
        $region66: #{tpu_custom_call.1} parent=63 // pred_check_branch
          %854 = sbr.rel (%p852) target = $region68
        $region67: #{tpu_custom_call.1} parent=63 // pred_region
          %s855 = sand.u32 %s221, 1
          %s856 = scalar_lea.sflag [#allocation4], %s855
          %s857 = sand.u32 %s221, 1
          %s858 = smul.addr %s857, 2
          %s859 = scalar_lea.vmem [#allocation3], %s858
          %861 = dma.done %s856, 32
        $region68: #{tpu_custom_call.1} parent=63 // pred_fallthru
          _
        // Predicated region
        $region69: #{tpu_custom_call.1} parent=63 // pred_check
          %p862 = pneg %p262
        $region70: #{tpu_custom_call.1} parent=63 // pred_check_branch
          %864 = sbr.rel (%p862) target = $region72
        $region71: #{tpu_custom_call.1} parent=63 // pred_region
          %s865 = sand.u32 %s247, 1
          %s866 = scalar_lea.sflag [#allocation6], %s865
          %s867 = sand.u32 %s247, 1
          %s868 = smul.addr %s867, 2
          %s869 = scalar_lea.vmem [#allocation5], %s868
          %871 = dma.done %s866, 32
        $region72: #{tpu_custom_call.1} parent=63 // pred_fallthru
          _
      $region64: #{tpu_custom_call.1} parent=5 // pred_fallthru
        _
    $region6: #{tpu_custom_call.1} parent=1 // loop_footer
      %s28 = sadd.s32 1, %s24
    $region7: #{tpu_custom_call.1} parent=1 // loop_footer_branch
      %23 = sbr.rel target = $region3
    $region8: #{tpu_custom_call.1} parent=1 // loop_exit
      _
    %872 = vsyncpa [#allocation4], 1
    %s873 = scalar_lea.sflag [#allocation4], 1
    %874 = vsyncpa %s873, 1
    %875 = vsyncpa [#allocation6], 1
    %s876 = scalar_lea.sflag [#allocation6], 1
    %877 = vsyncpa %s876, 1

// kernel: tpu_custom_call.1
$region0: #{tpu_custom_call.1}
  #allocation0 [shape = 'u32[]', space=smem, size = 0x4, offset = 0x4, fixed_abs, tag = 'smem constant byte address 0x4 - core index']
  #allocation1 [shape = 'u32[72,128]{1,0:T(1,128)}', space=vmem, size = 0x9000, scoped, tag = 'internal scratch']
  #allocation2 [shape = 'f32[1,1]{1,0:T(1,128)S(1)}', space=vmem, size = 0x200, scoped, tag = 'scoped memory for tpu_custom_call.1']
  %s0 = inlined_call_operand.vmem [shape: f32[64,32], index: 0, kind: input, shape index: {}]
  %s1 = inlined_call_operand.vmem [shape: f32[64,1], index: 1, kind: input, shape index: {}]
  %s2 = inlined_call_operand.vmem [shape: f32[64,1], index: 2, kind: input, shape index: {}]
  %s3 = inlined_call_operand.vmem [shape: f32[32,64], index: 3, kind: input, shape index: {}]
  %s4 = inlined_call_operand.vmem [shape: f32[1,64], index: 4, kind: input, shape index: {}]
  %s5 = inlined_call_operand.vmem [shape: f32[64,8], index: 5, kind: input, shape index: {}]
  %s6 = inlined_call_operand.vmem [shape: f32[32,1], index: 6, kind: input, shape index: {}]
  %s7 = inlined_call_operand.<no memory space> [shape: f32[1,1], index: 7, kind: input, shape index: {}]
  %s8 = inlined_call_operand.hbm [shape: f32[2,2,8], index: 8, kind: output, shape index: {0}]
  %s9 = inlined_call_operand.hbm [shape: f32[2,2,8], index: 9, kind: output, shape index: {1}]
  %10 = xla_tuple %s8, %s9
  %s11 = sld [smem:[#allocation0]]
  $region73: #{tpu_custom_call.1} parent=0
    _
  %s13 = ssub.s32 1, %s11
  %s14 = scalar_select 0, %s13, %s11
  %v15 = vstv %s7
  %16 = vst [vmem:[#allocation2] sm:$0x1] %v15
  $region1: #{tpu_custom_call.1} parent=0
    #allocation3 [shape = 'u8[2048]{0}', space=vmem, size = 0x800, scoped, tag = 'output window, operand 0']
    #allocation4 [shape = 's32[2]{0}', space=sflag, size = 0x8, scoped, tag = 'scoped memory for tpu_custom_call.1']
    #allocation5 [shape = 'u8[2048]{0}', space=vmem, size = 0x800, scoped, tag = 'output window, operand 1']
    #allocation6 [shape = 's32[2]{0}', space=sflag, size = 0x8, scoped, tag = 'scoped memory for tpu_custom_call.1']
    %17 = vsyncpa [#allocation4], 0
    %s18 = scalar_lea.sflag [#allocation4], 1
    %19 = vsyncpa %s18, 0
    %20 = vsyncpa [#allocation6], 0
    %s21 = scalar_lea.sflag [#allocation6], 1
    %22 = vsyncpa %s21, 0
    loop: start=0, step=1, limit=4
    $region2: #{tpu_custom_call.1} parent=1 // loop_pre_header
      _
    $region3: #{tpu_custom_call.1} parent=1 // loop_header
      %s24 = sphi 0, %s28
      %p25 = scmp.ge.s32.totalorder %s24, 4
      %s34 = sphi 0, %s36
      %s37 = sphi 0, %s34
      %s38 = sphi 0, %s37
      %s54 = sphi 0, %s38
      %s60 = sphi 0, %s62
      %s63 = sphi 0, %s60
      %s64 = sphi 0, %s63
      %s80 = sphi 0, %s64
      %s86 = sphi 0, %s88
      %s89 = sphi 0, %s86
      %s90 = sphi 0, %s89
      %s106 = sphi 0, %s90
      %s110 = sphi 0, %s110
      %s112 = sphi 0, %s110
      %s113 = sphi 0, %s112
      %s127 = sphi 0, %s113
      %s131 = sphi 0, %s131
      %s133 = sphi 0, %s131
      %s134 = sphi 0, %s133
      %s148 = sphi 0, %s134
      %s152 = sphi 0, %s152
      %s154 = sphi 0, %s152
      %s155 = sphi 0, %s154
      %s169 = sphi 0, %s155
      %s173 = sphi 0, %s173
      %s175 = sphi 0, %s173
      %s176 = sphi 0, %s175
      %s190 = sphi 0, %s176
      %s194 = sphi 0, %s194
      %s196 = sphi 0, %s194
      %s197 = sphi 0, %s196
      %s211 = sphi 0, %s197
      %s217 = sphi 0, %s219
      %s220 = sphi 0, %s217
      %s221 = sphi 0, %s220
      %s237 = sphi 0, %s221
      %s243 = sphi 0, %s245
      %s246 = sphi 0, %s243
      %s247 = sphi 0, %s246
      %s263 = sphi 0, %s247
    $region4: #{tpu_custom_call.1} parent=1 // loop_header_branch
      %27 = sbr.rel (%p25) target = $region8
    $region5: #{tpu_custom_call.1} parent=1 // loop_body
      %s29 = ssub.s32 %s24, 1
      %s30 = ssub.s32 %s24, 2
      %s31 = sadd.s32 %s24, 1
      %s32 = ssub.s32 %s24, %s31
      %p33 = scmp.eq.s32.totalorder %s32, 0
      %s35 = sadd.s32 %s34, 1
      %s36 = scalar_select %p33, %s34, %s35
      %p39 = pneg %p33
      %p40 = scmp.eq.s32.totalorder %s24, 1
      %p41 = por %p39, %p40
      %p42 = scmp.ne.s32.totalorder %s34, %s37
      %p43 = scmp.eq.s32.totalorder %s24, 0
      %p44 = por %p42, %p43
      %p45 = scmp.ne.s32.totalorder %s34, %s37
      %p46 = scmp.eq.s32.totalorder %s29, 1
      %p47 = por %p45, %p46
      %p48 = scmp.ne.s32.totalorder %s37, %s38
      %p49 = scmp.eq.s32.totalorder %s29, 0
      %p50 = por %p48, %p49
      %p51 = scmp.ne.s32.totalorder %s37, %s38
      %p52 = scmp.eq.s32.totalorder %s30, 1
      %p53 = por %p51, %p52
      %p55 = scmp.ne.s32.totalorder %s38, %s54
      %p56 = scmp.eq.s32.totalorder %s30, 0
      %p57 = por %p55, %p56
      %s58 = ssub.s32 %s24, %s31
      %p59 = scmp.eq.s32.totalorder %s58, 0
      %s61 = sadd.s32 %s60, 1
      %s62 = scalar_select %p59, %s60, %s61
      %p65 = pneg %p59
      %p66 = scmp.eq.s32.totalorder %s24, 1
      %p67 = por %p65, %p66
      %p68 = scmp.ne.s32.totalorder %s60, %s63
      %p69 = scmp.eq.s32.totalorder %s24, 0
      %p70 = por %p68, %p69
      %p71 = scmp.ne.s32.totalorder %s60, %s63
      %p72 = scmp.eq.s32.totalorder %s29, 1
      %p73 = por %p71, %p72
      %p74 = scmp.ne.s32.totalorder %s63, %s64
      %p75 = scmp.eq.s32.totalorder %s29, 0
      %p76 = por %p74, %p75
      %p77 = scmp.ne.s32.totalorder %s63, %s64
      %p78 = scmp.eq.s32.totalorder %s30, 1
      %p79 = por %p77, %p78
      %p81 = scmp.ne.s32.totalorder %s64, %s80
      %p82 = scmp.eq.s32.totalorder %s30, 0
      %p83 = por %p81, %p82
      %s84 = ssub.s32 %s24, %s31
      %p85 = scmp.eq.s32.totalorder %s84, 0
      %s87 = sadd.s32 %s86, 1
      %s88 = scalar_select %p85, %s86, %s87
      %p91 = pneg %p85
      %p92 = scmp.eq.s32.totalorder %s24, 1
      %p93 = por %p91, %p92
      %p94 = scmp.ne.s32.totalorder %s86, %s89
      %p95 = scmp.eq.s32.totalorder %s24, 0
      %p96 = por %p94, %p95
      %p97 = scmp.ne.s32.totalorder %s86, %s89
      %p98 = scmp.eq.s32.totalorder %s29, 1
      %p99 = por %p97, %p98
      %p100 = scmp.ne.s32.totalorder %s89, %s90
      %p101 = scmp.eq.s32.totalorder %s29, 0
      %p102 = por %p100, %p101
      %p103 = scmp.ne.s32.totalorder %s89, %s90
      %p104 = scmp.eq.s32.totalorder %s30, 1
      %p105 = por %p103, %p104
      %p107 = scmp.ne.s32.totalorder %s90, %s106
      %p108 = scmp.eq.s32.totalorder %s30, 0
      %p109 = por %p107, %p108
      %s111 = sadd.s32 %s110, 1
      %p114 = scmp.eq.s32.totalorder %s24, 1
      %p115 = scmp.ne.s32.totalorder %s110, %s112
      %p116 = scmp.eq.s32.totalorder %s24, 0
      %p117 = por %p115, %p116
      %p118 = scmp.ne.s32.totalorder %s110, %s112
      %p119 = scmp.eq.s32.totalorder %s29, 1
      %p120 = por %p118, %p119
      %p121 = scmp.ne.s32.totalorder %s112, %s113
      %p122 = scmp.eq.s32.totalorder %s29, 0
      %p123 = por %p121, %p122
      %p124 = scmp.ne.s32.totalorder %s112, %s113
      %p125 = scmp.eq.s32.totalorder %s30, 1
      %p126 = por %p124, %p125
      %p128 = scmp.ne.s32.totalorder %s113, %s127
      %p129 = scmp.eq.s32.totalorder %s30, 0
      %p130 = por %p128, %p129
      %s132 = sadd.s32 %s131, 1
      %p135 = scmp.eq.s32.totalorder %s24, 1
      %p136 = scmp.ne.s32.totalorder %s131, %s133
      %p137 = scmp.eq.s32.totalorder %s24, 0
      %p138 = por %p136, %p137
      %p139 = scmp.ne.s32.totalorder %s131, %s133
      %p140 = scmp.eq.s32.totalorder %s29, 1
      %p141 = por %p139, %p140
      %p142 = scmp.ne.s32.totalorder %s133, %s134
      %p143 = scmp.eq.s32.totalorder %s29, 0
      %p144 = por %p142, %p143
      %p145 = scmp.ne.s32.totalorder %s133, %s134
      %p146 = scmp.eq.s32.totalorder %s30, 1
      %p147 = por %p145, %p146
      %p149 = scmp.ne.s32.totalorder %s134, %s148
      %p150 = scmp.eq.s32.totalorder %s30, 0
      %p151 = por %p149, %p150
      %s153 = sadd.s32 %s152, 1
      %p156 = scmp.eq.s32.totalorder %s24, 1
      %p157 = scmp.ne.s32.totalorder %s152, %s154
      %p158 = scmp.eq.s32.totalorder %s24, 0
      %p159 = por %p157, %p158
      %p160 = scmp.ne.s32.totalorder %s152, %s154
      %p161 = scmp.eq.s32.totalorder %s29, 1
      %p162 = por %p160, %p161
      %p163 = scmp.ne.s32.totalorder %s154, %s155
      %p164 = scmp.eq.s32.totalorder %s29, 0
      %p165 = por %p163, %p164
      %p166 = scmp.ne.s32.totalorder %s154, %s155
      %p167 = scmp.eq.s32.totalorder %s30, 1
      %p168 = por %p166, %p167
      %p170 = scmp.ne.s32.totalorder %s155, %s169
      %p171 = scmp.eq.s32.totalorder %s30, 0
      %p172 = por %p170, %p171
      %s174 = sadd.s32 %s173, 1
      %p177 = scmp.eq.s32.totalorder %s24, 1
      %p178 = scmp.ne.s32.totalorder %s173, %s175
      %p179 = scmp.eq.s32.totalorder %s24, 0
      %p180 = por %p178, %p179
      %p181 = scmp.ne.s32.totalorder %s173, %s175
      %p182 = scmp.eq.s32.totalorder %s29, 1
      %p183 = por %p181, %p182
      %p184 = scmp.ne.s32.totalorder %s175, %s176
      %p185 = scmp.eq.s32.totalorder %s29, 0
      %p186 = por %p184, %p185
      %p187 = scmp.ne.s32.totalorder %s175, %s176
      %p188 = scmp.eq.s32.totalorder %s30, 1
      %p189 = por %p187, %p188
      %p191 = scmp.ne.s32.totalorder %s176, %s190
      %p192 = scmp.eq.s32.totalorder %s30, 0
      %p193 = por %p191, %p192
      %s195 = sadd.s32 %s194, 1
      %p198 = scmp.eq.s32.totalorder %s24, 1
      %p199 = scmp.ne.s32.totalorder %s194, %s196
      %p200 = scmp.eq.s32.totalorder %s24, 0
      %p201 = por %p199, %p200
      %p202 = scmp.ne.s32.totalorder %s194, %s196
      %p203 = scmp.eq.s32.totalorder %s29, 1
      %p204 = por %p202, %p203
      %p205 = scmp.ne.s32.totalorder %s196, %s197
      %p206 = scmp.eq.s32.totalorder %s29, 0
      %p207 = por %p205, %p206
      %p208 = scmp.ne.s32.totalorder %s196, %s197
      %p209 = scmp.eq.s32.totalorder %s30, 1
      %p210 = por %p208, %p209
      %p212 = scmp.ne.s32.totalorder %s197, %s211
      %p213 = scmp.eq.s32.totalorder %s30, 0
      %p214 = por %p212, %p213
      %s215 = ssub.s32 %s24, %s31
      %p216 = scmp.eq.s32.totalorder %s215, 0
      %s218 = sadd.s32 %s217, 1
      %s219 = scalar_select %p216, %s217, %s218
      %p222 = pneg %p216
      %p223 = scmp.eq.s32.totalorder %s24, 1
      %p224 = por %p222, %p223
      %p225 = scmp.ne.s32.totalorder %s217, %s220
      %p226 = scmp.eq.s32.totalorder %s24, 0
      %p227 = por %p225, %p226
      %p228 = scmp.ne.s32.totalorder %s217, %s220
      %p229 = scmp.eq.s32.totalorder %s29, 1
      %p230 = por %p228, %p229
      %p231 = scmp.ne.s32.totalorder %s220, %s221
      %p232 = scmp.eq.s32.totalorder %s29, 0
      %p233 = por %p231, %p232
      %p234 = scmp.ne.s32.totalorder %s220, %s221
      %p235 = scmp.eq.s32.totalorder %s30, 1
      %p236 = por %p234, %p235
      %p238 = scmp.ne.s32.totalorder %s221, %s237
      %p239 = scmp.eq.s32.totalorder %s30, 0
      %p240 = por %p238, %p239
      %s241 = ssub.s32 %s24, %s31
      %p242 = scmp.eq.s32.totalorder %s241, 0
      %s244 = sadd.s32 %s243, 1
      %s245 = scalar_select %p242, %s243, %s244
      %p248 = pneg %p242
      %p249 = scmp.eq.s32.totalorder %s24, 1
      %p250 = por %p248, %p249
      %p251 = scmp.ne.s32.totalorder %s243, %s246
      %p252 = scmp.eq.s32.totalorder %s24, 0
      %p253 = por %p251, %p252
      %p254 = scmp.ne.s32.totalorder %s243, %s246
      %p255 = scmp.eq.s32.totalorder %s29, 1
      %p256 = por %p254, %p255
      %p257 = scmp.ne.s32.totalorder %s246, %s247
      %p258 = scmp.eq.s32.totalorder %s29, 0
      %p259 = por %p257, %p258
      %p260 = scmp.ne.s32.totalorder %s246, %s247
      %p261 = scmp.eq.s32.totalorder %s30, 1
      %p262 = por %p260, %p261
      %p264 = scmp.ne.s32.totalorder %s247, %s263
      %p265 = scmp.eq.s32.totalorder %s30, 0
      %p266 = por %p264, %p265
      %p267 = scmp.le.s32.totalorder 1, %s24
      %p268 = scmp.lt.s32.totalorder %s24, 3
      %p269 = pnand %p267, %p268
      %p270 = pneg %p269
      // Predicated region
      $region9: #{tpu_custom_call.1} parent=5 // pred_check
        _
      $region10: #{tpu_custom_call.1} parent=5 // pred_check_branch
        %272 = sbr.rel (%p269) target = $region12
      $region11: #{tpu_custom_call.1} parent=5 // pred_region
        %s273 = ssub.s32 %s24, 1
        // Predicated region
        $region13: #{tpu_custom_call.1} parent=11 // pred_check
          %p274 = pneg %p123
        $region14: #{tpu_custom_call.1} parent=11 // pred_check_branch
          %276 = sbr.rel (%p274) target = $region16
        $region15: #{tpu_custom_call.1} parent=11 // pred_region
          _
        $region16: #{tpu_custom_call.1} parent=11 // pred_fallthru
          _
        // Predicated region
        $region17: #{tpu_custom_call.1} parent=11 // pred_check
          %p277 = pneg %p144
        $region18: #{tpu_custom_call.1} parent=11 // pred_check_branch
          %279 = sbr.rel (%p277) target = $region20
        $region19: #{tpu_custom_call.1} parent=11 // pred_region
          _
        $region20: #{tpu_custom_call.1} parent=11 // pred_fallthru
          _
        // Predicated region
        $region21: #{tpu_custom_call.1} parent=11 // pred_check
          %p280 = pneg %p165
        $region22: #{tpu_custom_call.1} parent=11 // pred_check_branch
          %282 = sbr.rel (%p280) target = $region24
        $region23: #{tpu_custom_call.1} parent=11 // pred_region
          _
        $region24: #{tpu_custom_call.1} parent=11 // pred_fallthru
          _
        // Predicated region
        $region25: #{tpu_custom_call.1} parent=11 // pred_check
          %p283 = pneg %p186
        $region26: #{tpu_custom_call.1} parent=11 // pred_check_branch
          %285 = sbr.rel (%p283) target = $region28
        $region27: #{tpu_custom_call.1} parent=11 // pred_region
          _
        $region28: #{tpu_custom_call.1} parent=11 // pred_fallthru
          _
        // Predicated region
        $region29: #{tpu_custom_call.1} parent=11 // pred_check
          %p286 = pneg %p207
        $region30: #{tpu_custom_call.1} parent=11 // pred_check_branch
          %288 = sbr.rel (%p286) target = $region32
        $region31: #{tpu_custom_call.1} parent=11 // pred_region
          _
        $region32: #{tpu_custom_call.1} parent=11 // pred_fallthru
          _
      $region12: #{tpu_custom_call.1} parent=5 // pred_fallthru
        _
      %p289 = scmp.lt.s32.totalorder %s24, 2
      // Predicated region
      $region33: #{tpu_custom_call.1} parent=5 // pred_check
        %p290 = pneg %p289
      $region34: #{tpu_custom_call.1} parent=5 // pred_check_branch
        %292 = sbr.rel (%p290) target = $region36
      $region35: #{tpu_custom_call.1} parent=5 // pred_region
        // Predicated region
        $region37: #{tpu_custom_call.1} parent=35 // pred_check
          %p293 = pneg %p44
        $region38: #{tpu_custom_call.1} parent=35 // pred_check_branch
          %295 = sbr.rel (%p293) target = $region40
        $region39: #{tpu_custom_call.1} parent=35 // pred_region
          %s296 = smul.u32 4, %s24
          %p297 = scmp.lt.s32.totalorder %s296, 7
          %s298 = scalar_select %p297, %s296, 7
          %s299 = smul.addr %s298, 8
          %s300 = scalar_lea.vmem %s0, %s299
          %s301 = smul.u32 4, %s24
        $region40: #{tpu_custom_call.1} parent=35 // pred_fallthru
          _
        // Predicated region
        $region41: #{tpu_custom_call.1} parent=35 // pred_check
          %p302 = pneg %p70
        $region42: #{tpu_custom_call.1} parent=35 // pred_check_branch
          %304 = sbr.rel (%p302) target = $region44
        $region43: #{tpu_custom_call.1} parent=35 // pred_region
          %s305 = smul.u32 4, %s24
          %p306 = scmp.lt.s32.totalorder %s305, 7
          %s307 = scalar_select %p306, %s305, 7
          %s308 = smul.addr %s307, 8
          %s309 = scalar_lea.vmem %s1, %s308
          %s310 = smul.u32 4, %s24
        $region44: #{tpu_custom_call.1} parent=35 // pred_fallthru
          _
        // Predicated region
        $region45: #{tpu_custom_call.1} parent=35 // pred_check
          %p311 = pneg %p96
        $region46: #{tpu_custom_call.1} parent=35 // pred_check_branch
          %313 = sbr.rel (%p311) target = $region48
        $region47: #{tpu_custom_call.1} parent=35 // pred_region
          %s314 = smul.u32 4, %s24
          %p315 = scmp.lt.s32.totalorder %s314, 7
          %s316 = scalar_select %p315, %s314, 7
          %s317 = smul.addr %s316, 8
          %s318 = scalar_lea.vmem %s2, %s317
          %s319 = smul.u32 4, %s24
        $region48: #{tpu_custom_call.1} parent=35 // pred_fallthru
          _
      $region36: #{tpu_custom_call.1} parent=5 // pred_fallthru
        _
      %p320 = scmp.le.s32.totalorder 1, %s24
      %p321 = scmp.lt.s32.totalorder %s24, 3
      %p322 = pnand %p320, %p321
      %p323 = pneg %p322
      // Predicated region
      $region49: #{tpu_custom_call.1} parent=5 // pred_check
        _
      $region50: #{tpu_custom_call.1} parent=5 // pred_check_branch
        %325 = sbr.rel (%p322) target = $region52
      $region51: #{tpu_custom_call.1} parent=5 // pred_region
        %s326 = ssub.s32 %s24, 1
        %s327 = smul.u32 4, %s29
        %p328 = scmp.lt.s32.totalorder %s327, 7
        %s329 = scalar_select %p328, %s327, 7
        %s330 = smul.addr %s329, 8
        %s331 = scalar_lea.vmem %s0, %s330
        %p332 = pneg %p50
        %p333 = pneg %p47
        %s334 = smul.u32 4, %s29
        %p335 = scmp.lt.s32.totalorder %s334, 7
        %s336 = scalar_select %p335, %s334, 7
        %s337 = smul.addr %s336, 8
        %s338 = scalar_lea.vmem %s1, %s337
        %p339 = pneg %p76
        %p340 = pneg %p73
        %s341 = smul.u32 4, %s29
        %p342 = scmp.lt.s32.totalorder %s341, 7
        %s343 = scalar_select %p342, %s341, 7
        %s344 = smul.addr %s343, 8
        %s345 = scalar_lea.vmem %s2, %s344
        %p346 = pneg %p102
        %p347 = pneg %p99
        %p348 = pneg %p123
        %p349 = pneg %p120
        %p350 = pneg %p144
        %p351 = pneg %p141
        %p352 = pneg %p165
        %p353 = pneg %p162
        %p354 = pneg %p186
        %p355 = pneg %p183
        %p356 = pneg %p207
        %p357 = pneg %p204
        %p358 = pneg %p233
        %p359 = pneg %p230
        %s360 = sand.u32 %s220, 1
        %s361 = scalar_lea.sflag [#allocation4], %s360
        %s362 = sand.u32 %s220, 1
        %s363 = smul.addr %s362, 2
        %s364 = scalar_lea.vmem [#allocation3], %s363
        %p365 = pneg %p259
        %p366 = pneg %p256
        %s367 = sand.u32 %s246, 1
        %s368 = scalar_lea.sflag [#allocation6], %s367
        %s369 = sand.u32 %s246, 1
        %s370 = smul.addr %s369, 2
        %s371 = scalar_lea.vmem [#allocation5], %s370
        %s372 = smul.u32 4, %s29
        %p373 = scmp.lt.s32.totalorder %s372, 7
        %s374 = scalar_select %p373, %s372, 7
        %s375 = smul.addr %s374, 8
        %s376 = scalar_lea.vmem %s0, %s375
        %s377 = smul.u32 4, %s29
        %s378 = smul.u32 4, %s29
        %p379 = scmp.lt.s32.totalorder %s378, 7
        %s380 = scalar_select %p379, %s378, 7
        %s381 = smul.addr %s380, 8
        %s382 = scalar_lea.vmem %s1, %s381
        %s383 = smul.u32 4, %s29
        %s384 = smul.u32 4, %s29
        %p385 = scmp.lt.s32.totalorder %s384, 7
        %s386 = scalar_select %p385, %s384, 7
        %s387 = smul.addr %s386, 8
        %s388 = scalar_lea.vmem %s2, %s387
        %s389 = smul.u32 4, %s29
        %v390 = vld [vmem:[%s376] sm:$0xff]
        %v391 = vld [vmem:[%s376 + $0x8] sm:$0xff]
        %v392 = vld [vmem:[%s376 + $0x10] sm:$0xff]
        %v393 = vld [vmem:[%s376 + $0x18] sm:$0xff]
        %v394 = vld [vmem:[%s3] sm:$0xff]
        %v395 = vld [vmem:[%s3 + $0x8] sm:$0xff]
        %v396 = vld [vmem:[%s3 + $0x10] sm:$0xff]
        %v397 = vld [vmem:[%s3 + $0x18] sm:$0xff]
        %v398 = vld [vmem:[%s4] sm:$0x1]
        %v400 = vperm.slane %v398, 0
        %vm402 = vcmask 261120
        %v404 = vsel %vm402, %v390, 0
        %v407 = vsel %vm402, %v391, 0
        %v410 = vsel %vm402, %v392, 0
        %v413 = vsel %vm402, %v393, 0
        %415 = vmatpush.msra.mxu0 0.0
        %416 = vmatpush.msra.mxu0 0.0
        %417 = vmatpush.msra.mxu0 0.0
        %418 = vmatpush.msra.mxu0 0.0
        %419 = vmatpush.msra.mxu0 0.0
        %420 = vmatpush.msra.mxu0 0.0
        %421 = vmatpush.msra.mxu0 0.0
        %422 = vmatpush.msra.mxu0 0.0
        %423 = vmatpush.msra.mxu0 0.0
        %424 = vmatpush.msra.mxu0 0.0
        %425 = vmatpush.msra.mxu0 0.0
        %426 = vmatpush.msra.mxu0 0.0
        %427 = vmatpush.msra.mxu0 %v397
        %428 = vmatpush.msra.mxu0 %v396
        %429 = vmatpush.msra.mxu0 %v395
        %430 = vmatpush.msra.mxu0 %v394
        %431 = vmatmul.f32.gmra.mxu0 %v404
        %v432 = vpop.f32.mrf.mxu0
        %v433 = vadd.f32 %v400, %v432
        %434 = vmatmul.f32.gmra.mxu0 %v407
        %v435 = vpop.f32.mrf.mxu0
        %v436 = vadd.f32 %v400, %v435
        %437 = vmatmul.f32.gmra.mxu0 %v410
        %v438 = vpop.f32.mrf.mxu0
        %v439 = vadd.f32 %v400, %v438
        %440 = vmatmul.f32.gmra.mxu0 %v413
        %v441 = vpop.f32.mrf.mxu0
        %v442 = vadd.f32 %v400, %v441
        %443 = vdwg.mxu0
        %v444 = vtanh.pop %v433
        %v445 = vtanh.pop %v436
        %v446 = vtanh.pop %v439
        %v447 = vtanh.pop %v442
        %v448 = vld [vmem:[%s5] sm:$0xff]
        %v449 = vld [vmem:[%s5 + $0x8] sm:$0xff]
        %v450 = vld [vmem:[%s5 + $0x10] sm:$0xff]
        %v451 = vld [vmem:[%s5 + $0x18] sm:$0xff]
        %v452 = vld [vmem:[%s5 + $0x20] sm:$0xff]
        %v453 = vld [vmem:[%s5 + $0x28] sm:$0xff]
        %v454 = vld [vmem:[%s5 + $0x30] sm:$0xff]
        %v455 = vld [vmem:[%s5 + $0x38] sm:$0xff]
        %vm456 = vcmask 523264
        %v458 = vsel %vm456, %v444, 0
        %v461 = vsel %vm456, %v445, 0
        %v464 = vsel %vm456, %v446, 0
        %v467 = vsel %vm456, %v447, 0
        %469 = vmatpush.msra.mxu0 0.0
        %470 = vmatpush.msra.mxu0 0.0
        %471 = vmatpush.msra.mxu0 0.0
        %472 = vmatpush.msra.mxu0 0.0
        %473 = vmatpush.msra.mxu0 0.0
        %474 = vmatpush.msra.mxu0 0.0
        %475 = vmatpush.msra.mxu0 0.0
        %476 = vmatpush.msra.mxu0 0.0
        %477 = vmatpush.msra.mxu0 %v455
        %478 = vmatpush.msra.mxu0 %v454
        %479 = vmatpush.msra.mxu0 %v453
        %480 = vmatpush.msra.mxu0 %v452
        %481 = vmatpush.msra.mxu0 %v451
        %482 = vmatpush.msra.mxu0 %v450
        %483 = vmatpush.msra.mxu0 %v449
        %484 = vmatpush.msra.mxu0 %v448
        %485 = vmatmul.f32.gmra.mxu0 %v458
        %v486 = vpop.f32.mrf.mxu0
        %v487 = vadd.f32 0.0, %v486
        %488 = vmatmul.f32.gmra.mxu0 %v461
        %v489 = vpop.f32.mrf.mxu0
        %v490 = vadd.f32 0.0, %v489
        %491 = vmatmul.f32.gmra.mxu0 %v464
        %v492 = vpop.f32.mrf.mxu0
        %v493 = vadd.f32 0.0, %v492
        %494 = vmatmul.f32.gmra.mxu0 %v467
        %v495 = vpop.f32.mrf.mxu0
        %v496 = vadd.f32 0.0, %v495
        %497 = vdwg.mxu0
        %v498 = vld [vmem:[%s382] sm:$0xff]
        %v499 = vld [vmem:[%s382 + $0x8] sm:$0xff]
        %v500 = vld [vmem:[%s382 + $0x10] sm:$0xff]
        %v501 = vld [vmem:[%s382 + $0x18] sm:$0xff]
        %503 = vset.pattern.permute.xlu0 0
        %504 = vperm.xlu0 %503, %v498
        %v505 = vpop.permute.xlu0 %504
        %508 = vset.pattern.permute.xlu0 0
        %509 = vperm.xlu0 %508, %v499
        %v510 = vpop.permute.xlu0 %509
        %513 = vset.pattern.permute.xlu0 0
        %514 = vperm.xlu0 %513, %v500
        %v515 = vpop.permute.xlu0 %514
        %518 = vset.pattern.permute.xlu0 0
        %519 = vperm.xlu0 %518, %v501
        %v520 = vpop.permute.xlu0 %519
        %v522 = vmul.f32 %v505, %v487
        %v523 = vmul.f32 %v510, %v490
        %v524 = vmul.f32 %v515, %v493
        %v525 = vmul.f32 %v520, %v496
        %v526 = vld [vmem:[%s388] sm:$0xff]
        %v527 = vld [vmem:[%s388 + $0x8] sm:$0xff]
        %v528 = vld [vmem:[%s388 + $0x10] sm:$0xff]
        %v529 = vld [vmem:[%s388 + $0x18] sm:$0xff]
        %531 = vset.pattern.permute.xlu0 0
        %532 = vperm.xlu0 %531, %v526
        %v533 = vpop.permute.xlu0 %532
        %536 = vset.pattern.permute.xlu0 0
        %537 = vperm.xlu0 %536, %v527
        %v538 = vpop.permute.xlu0 %537
        %541 = vset.pattern.permute.xlu0 0
        %542 = vperm.xlu0 %541, %v528
        %v543 = vpop.permute.xlu0 %542
        %546 = vset.pattern.permute.xlu0 0
        %547 = vperm.xlu0 %546, %v529
        %v548 = vpop.permute.xlu0 %547
        %v550 = vadd.f32 %v522, %v533
        %v551 = vadd.f32 %v523, %v538
        %v552 = vadd.f32 %v524, %v543
        %v553 = vadd.f32 %v525, %v548
        %vm554 = vcmask 64512
        %v555 = vsel %vm554, %v550, -inf
        %v556 = vsel %vm554, %v551, -inf
        %v557 = vmax.f32 %v555, %v556
        %v558 = vrot.slane %v557, 4
        %v559 = vmax.f32 %v557, %v558
        %v560 = vrot.slane %v559, 2
        %v561 = vmax.f32 %v559, %v560
        %v562 = vrot.slane %v561, 1
        %v563 = vmax.f32 %v561, %v562
        %v564 = vsel %vm554, %v552, -inf
        %v565 = vsel %vm554, %v553, -inf
        %v566 = vmax.f32 %v564, %v565
        %v567 = vrot.slane %v566, 4
        %v568 = vmax.f32 %v566, %v567
        %v569 = vrot.slane %v568, 2
        %v570 = vmax.f32 %v568, %v569
        %v571 = vrot.slane %v570, 1
        %v572 = vmax.f32 %v570, %v571
        %v573 = vsub.f32 %v550, %v563
        %v574 = vsub.f32 %v551, %v563
        %v575 = vsub.f32 %v552, %v572
        %v576 = vsub.f32 %v553, %v572
        %v577 = vmul.f32 %v573, 1.442695
        %v578 = vpow.pop %v577
        %v579 = vmul.f32 %v574, 1.442695
        %v580 = vpow.pop %v579
        %v581 = vmul.f32 %v575, 1.442695
        %v582 = vpow.pop %v581
        %v583 = vmul.f32 %v576, 1.442695
        %v584 = vpow.pop %v583
        %v585 = vsel %vm554, %v578, 0.0
        %v586 = vsel %vm554, %v580, 0.0
        %v587 = vadd.f32 %v585, %v586
        %v588 = vrot.slane %v587, 4
        %v589 = vadd.f32 %v587, %v588
        %v590 = vrot.slane %v589, 2
        %v591 = vadd.f32 %v589, %v590
        %v592 = vrot.slane %v591, 1
        %v593 = vadd.f32 %v591, %v592
        %v594 = vsel %vm554, %v582, 0.0
        %v595 = vsel %vm554, %v584, 0.0
        %v596 = vadd.f32 %v594, %v595
        %v597 = vrot.slane %v596, 4
        %v598 = vadd.f32 %v596, %v597
        %v599 = vrot.slane %v598, 2
        %v600 = vadd.f32 %v598, %v599
        %v601 = vrot.slane %v600, 1
        %v602 = vadd.f32 %v600, %v601
        %v603 = vrcp.pop %v593
        %v604 = vmul.f32 %v593, %v603
        %v605 = vsub.f32 1.0, %v604
        %v606 = vmul.f32 %v603, %v605
        %v607 = vadd.f32 %v603, %v606
        %vm608 = vweird.f32 %v593
        %vm609 = vweird.f32 %v603
        %vm610 = vmor %vm608, %vm609
        %v611 = vsel %vm610, %v603, %v607
        %v612 = vand.u32 2147483647, %v593
        %vm613 = vcmp.eq.f32.partialorder %v612, 8.507059e+37
        %v614 = vand.u32 %v593, 2147483648
        %v615 = vor.u32 1.1754944e-38, %v614
        %v616 = vsel %vm613, %v615, %v611
        %v617 = vrcp.pop %v602
        %v618 = vmul.f32 %v602, %v617
        %v619 = vsub.f32 1.0, %v618
        %v620 = vmul.f32 %v617, %v619
        %v621 = vadd.f32 %v617, %v620
        %vm622 = vweird.f32 %v602
        %vm623 = vweird.f32 %v617
        %vm624 = vmor %vm622, %vm623
        %v625 = vsel %vm624, %v617, %v621
        %v626 = vand.u32 2147483647, %v602
        %vm627 = vcmp.eq.f32.partialorder %v626, 8.507059e+37
        %v628 = vand.u32 %v602, 2147483648
        %v629 = vor.u32 1.1754944e-38, %v628
        %v630 = vsel %vm627, %v629, %v625
        %v631 = vmul.f32 %v578, %v616
        %v632 = vmul.f32 %v580, %v616
        %v633 = vmul.f32 %v582, %v630
        %v634 = vmul.f32 %v584, %v630
        %v635 = vld [vmem:[%s6] sm:$0xff]
        %v636 = vld [vmem:[%s6 + $0x8] sm:$0xff]
        %v637 = vld [vmem:[%s6 + $0x10] sm:$0xff]
        %v638 = vld [vmem:[%s6 + $0x18] sm:$0xff]
        %639 = vmatpush.msra.mxu0 0.0
        %640 = vmatpush.msra.mxu0 0.0
        %641 = vmatpush.msra.mxu0 0.0
        %642 = vmatpush.msra.mxu0 0.0
        %643 = vmatpush.msra.mxu0 0.0
        %644 = vmatpush.msra.mxu0 0.0
        %645 = vmatpush.msra.mxu0 0.0
        %646 = vmatpush.msra.mxu0 0.0
        %647 = vmatpush.msra.mxu0 0.0
        %648 = vmatpush.msra.mxu0 0.0
        %649 = vmatpush.msra.mxu0 0.0
        %650 = vmatpush.msra.mxu0 0.0
        %651 = vmatpush.msra.mxu0 %v638
        %652 = vmatpush.msra.mxu0 %v637
        %653 = vmatpush.msra.mxu0 %v636
        %654 = vmatpush.msra.mxu0 %v635
        %655 = vmatmul.f32.gmra.mxu0 %v404
        %v656 = vpop.f32.mrf.mxu0
        %v657 = vadd.f32 0.0, %v656
        %658 = vmatmul.f32.gmra.mxu0 %v407
        %v659 = vpop.f32.mrf.mxu0
        %v660 = vadd.f32 0.0, %v659
        %661 = vmatmul.f32.gmra.mxu0 %v410
        %v662 = vpop.f32.mrf.mxu0
        %v663 = vadd.f32 0.0, %v662
        %664 = vmatmul.f32.gmra.mxu0 %v413
        %v665 = vpop.f32.mrf.mxu0
        %v666 = vadd.f32 0.0, %v665
        %667 = vdwg.mxu0
        %669 = vset.pattern.permute.xlu0 0
        %670 = vperm.xlu0 %669, %v657
        %v671 = vpop.permute.xlu0 %670
        %674 = vset.pattern.permute.xlu0 0
        %675 = vperm.xlu0 %674, %v660
        %v676 = vpop.permute.xlu0 %675
        %679 = vset.pattern.permute.xlu0 0
        %680 = vperm.xlu0 %679, %v663
        %v681 = vpop.permute.xlu0 %680
        %684 = vset.pattern.permute.xlu0 0
        %685 = vperm.xlu0 %684, %v666
        %v686 = vpop.permute.xlu0 %685
        %v688 = vmul.f32 %v631, %v671
        %v689 = vmul.f32 %v632, %v676
        %v690 = vmul.f32 %v633, %v681
        %v691 = vmul.f32 %v634, %v686
        %v692 = vsel %vm554, %v688, 0.0
        %v693 = vsel %vm554, %v689, 0.0
        %v694 = vadd.f32 %v692, %v693
        %v695 = vrot.slane %v694, 4
        %v696 = vadd.f32 %v694, %v695
        %v697 = vrot.slane %v696, 2
        %v698 = vadd.f32 %v696, %v697
        %v699 = vrot.slane %v698, 1
        %v700 = vadd.f32 %v698, %v699
        %v701 = vsel %vm554, %v690, 0.0
        %v702 = vsel %vm554, %v691, 0.0
        %v703 = vadd.f32 %v701, %v702
        %v704 = vrot.slane %v703, 4
        %v705 = vadd.f32 %v703, %v704
        %v706 = vrot.slane %v705, 2
        %v707 = vadd.f32 %v705, %v706
        %v708 = vrot.slane %v707, 1
        %v709 = vadd.f32 %v707, %v708
        %v710 = vld [vmem:[#allocation2] sm:$0x1]
        %v712 = vperm.slane %v710, 0
        %713 = vset.pattern.permute.xlu0 0
        %714 = vperm.xlu0 %713, %v712
        %v715 = vpop.permute.xlu0 %714
        %v717 = vadd.f32 %v700, %v715
        %v718 = vadd.f32 %v709, %v715
        %vm721 = vcmask 1041409
        %v722 = vsel %vm721, %v718, %v717
        %vm724 = vcmask 58368
        %725 = vst.msk [vmem:[%s364] sm:$0x3] %vm724, %v722
        %v726 = vsel %vm724, %v722, -inf
        %727 = vmax.xlane.f32.xlu0 %v726
        %v728 = vpop.xlane.xlu0 %727
        %v729 = vmax.f32 %v728, 0.0
        %v730 = vsub.f32 0.0, %v729
        %v731 = vmul.f32 %v730, 1.442695
        %v732 = vpow.pop %v731
        %v734 = vrot.slane %v729, 1
        %v737 = vsub.f32 %v717, %v729
        %v738 = vsub.f32 %v718, %v734
        %v739 = vmul.f32 %v737, 1.442695
        %v740 = vpow.pop %v739
        %v741 = vmul.f32 %v738, 1.442695
        %v742 = vpow.pop %v741
        %v745 = vrot.slane %v742, 7
        %v746 = vsel %vm721, %v745, %v740
        %v748 = vsel %vm724, %v746, 0.0
        %749 = vadd.xlane.f32.xlu0 %v748
        %v750 = vpop.xlane.xlu0 %749
        %v751 = vadd.f32 %v732, %v750
        %v752 = vrcp.pop %v751
        %v753 = vmul.f32 %v751, %v752
        %v754 = vsub.f32 1.0, %v753
        %v755 = vmul.f32 %v752, %v754
        %v756 = vadd.f32 %v752, %v755
        %vm757 = vweird.f32 %v751
        %vm758 = vweird.f32 %v752
        %vm759 = vmor %vm757, %vm758
        %v760 = vsel %vm759, %v752, %v756
        %v761 = vand.u32 2147483647, %v751
        %vm762 = vcmp.eq.f32.partialorder %v761, 8.507059e+37
        %v763 = vand.u32 %v751, 2147483648
        %v764 = vor.u32 1.1754944e-38, %v763
        %v765 = vsel %vm762, %v764, %v760
        %v766 = vmul.f32 %v732, %v765
        %v768 = vrot.slane %v765, 1
        %v771 = vmul.f32 %v740, %v765
        %v772 = vmul.f32 %v742, %v768
        %v773 = vlaneseq
        %v774 = vshrl.u32 %v773, 7
        %v775 = vlaneseq
        %v776 = vand.u32 %v775, 127
        %vm777 = vcmp.lt.s32.totalorder %v774, %v776
        %v778 = vsel %vm777, 1.0, 0.0
        %v781 = vrot.slane %v772, 7
        %v782 = vsel %vm721, %v781, %v771
        %v783 = vsel %vm554, %v782, 0
        %785 = vmatpush.msra.mxu0 0.0
        %786 = vmatpush.msra.mxu0 0.0
        %787 = vmatpush.msra.mxu0 0.0
        %788 = vmatpush.msra.mxu0 0.0
        %789 = vmatpush.msra.mxu0 0.0
        %790 = vmatpush.msra.mxu0 0.0
        %791 = vmatpush.msra.mxu0 0.0
        %792 = vmatpush.msra.mxu0 0.0
        %793 = vmatpush.msra.mxu0 0.0
        %794 = vmatpush.msra.mxu0 0.0
        %795 = vmatpush.msra.mxu0 0.0
        %796 = vmatpush.msra.mxu0 0.0
        %797 = vmatpush.msra.mxu0 0.0
        %798 = vmatpush.msra.mxu0 0.0
        %799 = vmatpush.msra.mxu0 0.0
        %800 = vmatpush.msra.mxu0 %v778
        %801 = vmatmul.f32.gmra.mxu0 %v783
        %v802 = vpop.f32.mrf.mxu0
        %v803 = vadd.f32 0.0, %v802
        %804 = vdwg.mxu0
        %v805 = vadd.f32 %v766, %v803
        %v806 = vmax.f32 %v805, 0.0001
        %v807 = vmin.f32 %v806, 0.9999
        %808 = vst.msk [vmem:[%s371] sm:$0x3] %vm724, %v807
        %s809 = sand.u32 %s220, 1
        %s810 = scalar_lea.sflag [#allocation4], %s809
        %s811 = sand.u32 %s220, 1
        %s812 = smul.addr %s811, 2
        %s813 = scalar_lea.vmem [#allocation3], %s812
        %s814 = sand.u32 %s246, 1
        %s815 = scalar_lea.sflag [#allocation6], %s814
        %s816 = sand.u32 %s246, 1
        %s817 = smul.addr %s816, 2
        %s818 = scalar_lea.vmem [#allocation5], %s817
        // Predicated region
        $region53: #{tpu_custom_call.1} parent=51 // pred_check
          %p819 = pneg %p230
        $region54: #{tpu_custom_call.1} parent=51 // pred_check_branch
          %821 = sbr.rel (%p819) target = $region56
        $region55: #{tpu_custom_call.1} parent=51 // pred_region
          %823 = vsyncadd %s810, 0
          %s824 = smul.addr %s29, 2
          %s825 = scalar_lea.hbm %s8, %s824
          %s827 = sshll.u32 %s813, 4
          %s828 = int_to_ptr.vmem [resolvable:$true] %s827
          %s829 = sshll.u32 %s825, 4
          %s830 = int_to_ptr.hbm [resolvable:$true] %s829
          %832 = dma.vmem_to_hbm [thread:$0]  %s828, 32, %s830, %s810
        $region56: #{tpu_custom_call.1} parent=51 // pred_fallthru
          _
        // Predicated region
        $region57: #{tpu_custom_call.1} parent=51 // pred_check
          %p833 = pneg %p256
        $region58: #{tpu_custom_call.1} parent=51 // pred_check_branch
          %835 = sbr.rel (%p833) target = $region60
        $region59: #{tpu_custom_call.1} parent=51 // pred_region
          %837 = vsyncadd %s815, 0
          %s838 = smul.addr %s29, 2
          %s839 = scalar_lea.hbm %s9, %s838
          %s841 = sshll.u32 %s818, 4
          %s842 = int_to_ptr.vmem [resolvable:$true] %s841
          %s843 = sshll.u32 %s839, 4
          %s844 = int_to_ptr.hbm [resolvable:$true] %s843
          %846 = dma.vmem_to_hbm [thread:$0]  %s842, 32, %s844, %s815
        $region60: #{tpu_custom_call.1} parent=51 // pred_fallthru
          _
      $region52: #{tpu_custom_call.1} parent=5 // pred_fallthru
        _
      %p847 = scmp.le.s32.totalorder 2, %s24
      // Predicated region
      $region61: #{tpu_custom_call.1} parent=5 // pred_check
        %p848 = pneg %p847
      $region62: #{tpu_custom_call.1} parent=5 // pred_check_branch
        %850 = sbr.rel (%p848) target = $region64
      $region63: #{tpu_custom_call.1} parent=5 // pred_region
        %s851 = ssub.s32 %s24, 2
        // Predicated region
        $region65: #{tpu_custom_call.1} parent=63 // pred_check
          %p852 = pneg %p236
        $region66: #{tpu_custom_call.1} parent=63 // pred_check_branch
          %854 = sbr.rel (%p852) target = $region68
        $region67: #{tpu_custom_call.1} parent=63 // pred_region
          %s855 = sand.u32 %s221, 1
          %s856 = scalar_lea.sflag [#allocation4], %s855
          %s857 = sand.u32 %s221, 1
          %s858 = smul.addr %s857, 2
          %s859 = scalar_lea.vmem [#allocation3], %s858
          %861 = dma.done %s856, 32
        $region68: #{tpu_custom_call.1} parent=63 // pred_fallthru
          _
        // Predicated region
        $region69: #{tpu_custom_call.1} parent=63 // pred_check
          %p862 = pneg %p262
        $region70: #{tpu_custom_call.1} parent=63 // pred_check_branch
          %864 = sbr.rel (%p862) target = $region72
        $region71: #{tpu_custom_call.1} parent=63 // pred_region
          %s865 = sand.u32 %s247, 1
          %s866 = scalar_lea.sflag [#allocation6], %s865
          %s867 = sand.u32 %s247, 1
          %s868 = smul.addr %s867, 2
          %s869 = scalar_lea.vmem [#allocation5], %s868
          %871 = dma.done %s866, 32
        $region72: #{tpu_custom_call.1} parent=63 // pred_fallthru
          _
      $region64: #{tpu_custom_call.1} parent=5 // pred_fallthru
        _
    $region6: #{tpu_custom_call.1} parent=1 // loop_footer
      %s28 = sadd.s32 1, %s24
    $region7: #{tpu_custom_call.1} parent=1 // loop_footer_branch
      %23 = sbr.rel target = $region3
    $region8: #{tpu_custom_call.1} parent=1 // loop_exit
      _
    %872 = vsyncpa [#allocation4], 1
    %s873 = scalar_lea.sflag [#allocation4], 1
    %874 = vsyncpa %s873, 1
    %875 = vsyncpa [#allocation6], 1
    %s876 = scalar_lea.sflag [#allocation6], 1
    %877 = vsyncpa %s876, 1

</llo_original>
